<compile_context>
chip_gen: v7x
topology: tpu7x:2x2x1
jax: 0.10.0
libtpu: 0.0.40
codegen_flags: <defaults>
</compile_context>

<pallas_src>
import jax
import jax.numpy as jnp
from jax.experimental import pallas as pl
from jax.experimental.pallas import tpu as pltpu

EMBEDDING_DIM = 50
HIDDEN_LAYER_1 = 50
HIDDEN_LAYER_2 = 50
IN_DIM = 28 * 28            # 784
CLS_HIDDEN = 128
NUM_CLASSES = 10
DEFAULT_TB = 1024           # batch rows per grid step


def _round_up(x, m):
    return ((x + m - 1) // m) * m


def _split_bf16(a):
    """Split an f32 array into (hi, lo) bf16 parts with a ~= hi + lo."""
    hi = a.astype(jnp.bfloat16)
    lo = (a - hi.astype(jnp.float32)).astype(jnp.bfloat16)
    return hi, lo


def feature_classifier_kernel(
    x_ref,                          # (TB, 784)  input tile (f32)
    w1h_ref, w1l_ref, b1_ref,       # encoder.fc1:   (784,50) bf16 x2, (1,50) f32
    w2h_ref, w2l_ref, b2_ref,       # encoder.fc2:   (50,50)  bf16 x2, (1,50) f32
    wfh_ref, wfl_ref, bf_ref,       # fused fc3@cls.fc1: (50,128) bf16 x2, (1,128) f32
    w4h_ref, w4l_ref, b4_ref,       # classifier.fc2: (128,10) bf16 x2, (1,10) f32
    out_ref,                        # (TB, 10)   log-probabilities
):
    def dot3(a, wh_ref, wl_ref):
        # bf16_3x matmul: a@W ~= a_hi@W_hi + a_lo@W_hi + a_hi@W_lo, f32 accum.
        # 3 native bf16 MXU passes; ~1e-6 from exact f32.
        a_hi, a_lo = _split_bf16(a)
        wh = wh_ref[...]
        acc = jnp.dot(a_hi, wh, preferred_element_type=jnp.float32)
        acc = acc + jnp.dot(a_lo, wh, preferred_element_type=jnp.float32)
        acc = acc + jnp.dot(a_hi, wl_ref[...], preferred_element_type=jnp.float32)
        return acc

    x = x_ref[...]

    # --- frozen encoder ---
    h = jnp.tanh(dot3(x, w1h_ref, w1l_ref) + b1_ref[...])
    h = jnp.tanh(dot3(h, w2h_ref, w2l_ref) + b2_ref[...])

    # --- encoder.fc3 fused with classifier.fc1 (no nonlinearity between) + ReLU ---
    h = jnp.maximum(dot3(h, wfh_ref, wfl_ref) + bf_ref[...], 0.0)

    # --- classifier.fc2 ---
    logits = dot3(h, w4h_ref, w4l_ref) + b4_ref[...]

    # --- log_softmax over the class axis ---
    m = jnp.max(logits, axis=-1, keepdims=True)
    shifted = logits - m
    lse = jnp.log(jnp.sum(jnp.exp(shifted), axis=-1, keepdims=True))
    out_ref[...] = (shifted - lse).astype(out_ref.dtype)


def preprocess_params(params):
    """One-time parameter prep (hoisted out of the per-call path).

    * Algebraic fusion of encoder.fc3 and classifier.fc1 (no nonlinearity
      between them):  (h @ ew3 + eb3) @ cw1 + cb1 == h @ (ew3@cw1) + (eb3@cw1 + cb1)
      computed at HIGHEST precision.
    * bf16 hi/lo splits of all weight matrices for the in-kernel bf16_3x matmuls.
    """
    hi = jax.lax.Precision.HIGHEST
    wf = jnp.dot(params["ew3"], params["cw1"], precision=hi)
    bf = jnp.dot(params["eb3"], params["cw1"], precision=hi) + params["cb1"]

    w1h, w1l = _split_bf16(params["ew1"])
    w2h, w2l = _split_bf16(params["ew2"])
    wfh, wfl = _split_bf16(wf)
    w4h, w4l = _split_bf16(params["cw2"])

    return dict(
        w1h=w1h, w1l=w1l, b1=params["eb1"],
        w2h=w2h, w2l=w2l, b2=params["eb2"],
        wfh=wfh, wfl=wfl, bf=bf,
        w4h=w4h, w4l=w4l, b4=params["cb2"],
    )


def feature_classifier(x, prepped, *, tb=DEFAULT_TB):
    """x: (B, 784) float32, prepped: preprocess_params(...) -> (B, 10) log-probs."""
    B = x.shape[0]

    # Batch tile: multiple of 8 (sublanes), big to amortize per-step overhead,
    # clamped for small B.  Keep >= 2 grid tiles when B >= 16 so both v7x
    # TensorCores get work (harmless on single-TC v5e/v6e).
    tb = min(tb, _round_up(max(B, 1), 8))
    if B >= 16:
        tb = min(tb, _round_up(pl.cdiv(B, 2), 8))
    num_tiles = pl.cdiv(B, tb)

    weight_ops = (
        prepped["w1h"], prepped["w1l"], prepped["b1"],
        prepped["w2h"], prepped["w2l"], prepped["b2"],
        prepped["wfh"], prepped["wfl"], prepped["bf"],
        prepped["w4h"], prepped["w4l"], prepped["b4"],
    )

    # Weights/biases: full-shape blocks, constant index_map -> DMA'd once and
    # VMEM-resident across all grid steps.
    def _const_spec(shape):
        return pl.BlockSpec(shape, lambda i: (0, 0))

    weight_specs = [_const_spec(op.shape) for op in weight_ops]

    flops_per_row = 2 * (
        IN_DIM * HIDDEN_LAYER_1
        + HIDDEN_LAYER_1 * HIDDEN_LAYER_2
        + HIDDEN_LAYER_2 * CLS_HIDDEN
        + CLS_HIDDEN * NUM_CLASSES
    )
    weight_bytes = sum(int(o.size) * o.dtype.itemsize for o in weight_ops)
    cost = pl.CostEstimate(
        flops=int(3 * B * flops_per_row),  # bf16_3x -> three MXU passes per matmul
        transcendentals=int(B * (HIDDEN_LAYER_1 + HIDDEN_LAYER_2 + NUM_CLASSES + 1)),
        bytes_accessed=int(B * IN_DIM * 4 + weight_bytes + B * NUM_CLASSES * 4),
    )

    return pl.pallas_call(
        feature_classifier_kernel,
        out_shape=jax.ShapeDtypeStruct((B, NUM_CLASSES), jnp.float32),
        grid=(num_tiles,),
        in_specs=[pl.BlockSpec((tb, IN_DIM), lambda i: (i, 0))] + weight_specs,
        out_specs=pl.BlockSpec((tb, NUM_CLASSES), lambda i: (i, 0)),
        compiler_params=pltpu.CompilerParams(
            dimension_semantics=("parallel",),
        ),
        cost_estimate=cost,
    )(x, *weight_ops)


def init_params(key):
    """Deterministic synthetic parameters (shapes match the nn.Module)."""
    ks = jax.random.split(key, 10)

    def lin(kw, kb, fan_in, fan_out):
        # uniform(-1/sqrt(fan_in), 1/sqrt(fan_in)), like torch.nn.Linear default
        bound = 1.0 / jnp.sqrt(jnp.float32(fan_in))
        w = jax.random.uniform(kw, (fan_in, fan_out), jnp.float32, -bound, bound)
        b = jax.random.uniform(kb, (1, fan_out), jnp.float32, -bound, bound)
        return w, b

    ew1, eb1 = lin(ks[0], ks[1], IN_DIM, HIDDEN_LAYER_1)
    ew2, eb2 = lin(ks[2], ks[3], HIDDEN_LAYER_1, HIDDEN_LAYER_2)
    ew3, eb3 = lin(ks[4], ks[5], HIDDEN_LAYER_2, EMBEDDING_DIM)
    cw1, cb1 = lin(ks[6], ks[7], EMBEDDING_DIM, CLS_HIDDEN)
    cw2, cb2 = lin(ks[8], ks[9], CLS_HIDDEN, NUM_CLASSES)
    return dict(
        ew1=ew1, eb1=eb1, ew2=ew2, eb2=eb2, ew3=ew3, eb3=eb3,
        cw1=cw1, cb1=cb1, cw2=cw2, cb2=cb2,
    )


def reference(x, p):
    """Pure-JAX reference of the PyTorch forward, at exact f32 precision."""
    hi = jax.lax.Precision.HIGHEST
    h = jnp.tanh(jnp.dot(x, p["ew1"], precision=hi) + p["eb1"])
    h = jnp.tanh(jnp.dot(h, p["ew2"], precision=hi) + p["eb2"])
    emb = jnp.dot(h, p["ew3"], precision=hi) + p["eb3"]
    h = jnp.maximum(jnp.dot(emb, p["cw1"], precision=hi) + p["cb1"], 0.0)
    logits = jnp.dot(h, p["cw2"], precision=hi) + p["cb2"]
    return jax.nn.log_softmax(logits, axis=1)


if __name__ == "__main__":
    key = jax.random.PRNGKey(0)
    kx, kp = jax.random.split(key)

    B = 37  # deliberately not a multiple of 8: exercises masked ragged edge blocks
    x = jax.random.normal(kx, (B, IN_DIM), jnp.float32)
    params = init_params(kp)

    prepped = preprocess_params(params)  # one-time, hoisted out of the call path

    out = jax.block_until_ready(feature_classifier(x, prepped))

    ref = reference(x, params)
    assert out.shape == (B, NUM_CLASSES)
    err = jnp.max(jnp.abs(out - ref))
    assert jnp.allclose(out, ref, atol=1e-4, rtol=1e-4), f"max abs err {err}"

    print("KERNEL_OK")
</pallas_src>

<mosaic_0001>
module attributes {stable_mosaic.version = 11 : i64} {
  func.func @feature_classifier_kernel(%arg0: i32, %arg1: memref<24x784xf32, #tpu.memory_space<vmem>>, %arg2: memref<784x50xbf16, #tpu.memory_space<vmem>>, %arg3: memref<784x50xbf16, #tpu.memory_space<vmem>>, %arg4: memref<1x50xf32, #tpu.memory_space<vmem>>, %arg5: memref<50x50xbf16, #tpu.memory_space<vmem>>, %arg6: memref<50x50xbf16, #tpu.memory_space<vmem>>, %arg7: memref<1x50xf32, #tpu.memory_space<vmem>>, %arg8: memref<50x128xbf16, #tpu.memory_space<vmem>>, %arg9: memref<50x128xbf16, #tpu.memory_space<vmem>>, %arg10: memref<1x128xf32, #tpu.memory_space<vmem>>, %arg11: memref<128x10xbf16, #tpu.memory_space<vmem>>, %arg12: memref<128x10xbf16, #tpu.memory_space<vmem>>, %arg13: memref<1x10xf32, #tpu.memory_space<vmem>>, %arg14: memref<24x10xf32, #tpu.memory_space<vmem>>) attributes {dimension_semantics = [#tpu.dimension_semantics<parallel>], iteration_bounds = array<i64: 2>, scalar_prefetch = 0 : i64, scratch_operands = 0 : i64, tpu.core_type = #tpu.core_type<tc>, window_params = [{transform_indices = @transform_0, window_bounds = array<i64: 24, 784>}, {pipeline_mode = #tpu.pipeline_mode<synchronous>, transform_indices = @transform_1, window_bounds = array<i64: 784, 50>}, {pipeline_mode = #tpu.pipeline_mode<synchronous>, transform_indices = @transform_2, window_bounds = array<i64: 784, 50>}, {pipeline_mode = #tpu.pipeline_mode<synchronous>, transform_indices = @transform_3, window_bounds = array<i64: 1, 50>}, {pipeline_mode = #tpu.pipeline_mode<synchronous>, transform_indices = @transform_4, window_bounds = array<i64: 50, 50>}, {pipeline_mode = #tpu.pipeline_mode<synchronous>, transform_indices = @transform_5, window_bounds = array<i64: 50, 50>}, {pipeline_mode = #tpu.pipeline_mode<synchronous>, transform_indices = @transform_6, window_bounds = array<i64: 1, 50>}, {pipeline_mode = #tpu.pipeline_mode<synchronous>, transform_indices = @transform_7, window_bounds = array<i64: 50, 128>}, {pipeline_mode = #tpu.pipeline_mode<synchronous>, transform_indices = @transform_8, window_bounds = array<i64: 50, 128>}, {pipeline_mode = #tpu.pipeline_mode<synchronous>, transform_indices = @transform_9, window_bounds = array<i64: 1, 128>}, {pipeline_mode = #tpu.pipeline_mode<synchronous>, transform_indices = @transform_10, window_bounds = array<i64: 128, 10>}, {pipeline_mode = #tpu.pipeline_mode<synchronous>, transform_indices = @transform_11, window_bounds = array<i64: 128, 10>}, {pipeline_mode = #tpu.pipeline_mode<synchronous>, transform_indices = @transform_12, window_bounds = array<i64: 1, 10>}, {transform_indices = @transform_13, window_bounds = array<i64: 24, 10>}]} {
    %c0 = arith.constant 0 : index
    %c0_0 = arith.constant 0 : index
    %0 = vector.load %arg1[%c0, %c0_0] : memref<24x784xf32, #tpu.memory_space<vmem>>, vector<24x784xf32>
    %1 = arith.truncf %0 : vector<24x784xf32> to vector<24x784xbf16>
    %2 = arith.extf %1 : vector<24x784xbf16> to vector<24x784xf32>
    %3 = arith.subf %0, %2 : vector<24x784xf32>
    %4 = arith.truncf %3 : vector<24x784xf32> to vector<24x784xbf16>
    %c0_1 = arith.constant 0 : index
    %c0_2 = arith.constant 0 : index
    %5 = vector.load %arg2[%c0_1, %c0_2] : memref<784x50xbf16, #tpu.memory_space<vmem>>, vector<784x50xbf16>
    %cst = arith.constant dense<0.000000e+00> : vector<24x50xf32>
    %6 = tpu.matmul %1, %5, %cst {dimension_numbers = #tpu.dot_dimension_numbers<[1], [0], [0], [1], [0, 0, 1, 1], [], []>} : vector<24x784xbf16>, vector<784x50xbf16>, vector<24x50xf32> -> vector<24x50xf32>
    %cst_3 = arith.constant dense<0.000000e+00> : vector<24x50xf32>
    %7 = tpu.matmul %4, %5, %cst_3 {dimension_numbers = #tpu.dot_dimension_numbers<[1], [0], [0], [1], [0, 0, 1, 1], [], []>} : vector<24x784xbf16>, vector<784x50xbf16>, vector<24x50xf32> -> vector<24x50xf32>
    %8 = arith.addf %6, %7 : vector<24x50xf32>
    %c0_4 = arith.constant 0 : index
    %c0_5 = arith.constant 0 : index
    %9 = vector.load %arg3[%c0_4, %c0_5] : memref<784x50xbf16, #tpu.memory_space<vmem>>, vector<784x50xbf16>
    %cst_6 = arith.constant dense<0.000000e+00> : vector<24x50xf32>
    %10 = tpu.matmul %1, %9, %cst_6 {dimension_numbers = #tpu.dot_dimension_numbers<[1], [0], [0], [1], [0, 0, 1, 1], [], []>} : vector<24x784xbf16>, vector<784x50xbf16>, vector<24x50xf32> -> vector<24x50xf32>
    %11 = arith.addf %8, %10 : vector<24x50xf32>
    %c0_7 = arith.constant 0 : index
    %c0_8 = arith.constant 0 : index
    %12 = vector.load %arg4[%c0_7, %c0_8] : memref<1x50xf32, #tpu.memory_space<vmem>>, vector<1x50xf32>
    %13 = vector.broadcast %12 : vector<1x50xf32> to vector<24x50xf32>
    %14 = arith.addf %11, %13 : vector<24x50xf32>
    %15 = math.tanh %14 : vector<24x50xf32>
    %16 = arith.truncf %15 : vector<24x50xf32> to vector<24x50xbf16>
    %17 = arith.extf %16 : vector<24x50xbf16> to vector<24x50xf32>
    %18 = arith.subf %15, %17 : vector<24x50xf32>
    %19 = arith.truncf %18 : vector<24x50xf32> to vector<24x50xbf16>
    %c0_9 = arith.constant 0 : index
    %c0_10 = arith.constant 0 : index
    %20 = vector.load %arg5[%c0_9, %c0_10] : memref<50x50xbf16, #tpu.memory_space<vmem>>, vector<50x50xbf16>
    %cst_11 = arith.constant dense<0.000000e+00> : vector<24x50xf32>
    %21 = tpu.matmul %16, %20, %cst_11 {dimension_numbers = #tpu.dot_dimension_numbers<[1], [0], [0], [1], [0, 0, 1, 1], [], []>} : vector<24x50xbf16>, vector<50x50xbf16>, vector<24x50xf32> -> vector<24x50xf32>
    %cst_12 = arith.constant dense<0.000000e+00> : vector<24x50xf32>
    %22 = tpu.matmul %19, %20, %cst_12 {dimension_numbers = #tpu.dot_dimension_numbers<[1], [0], [0], [1], [0, 0, 1, 1], [], []>} : vector<24x50xbf16>, vector<50x50xbf16>, vector<24x50xf32> -> vector<24x50xf32>
    %23 = arith.addf %21, %22 : vector<24x50xf32>
    %c0_13 = arith.constant 0 : index
    %c0_14 = arith.constant 0 : index
    %24 = vector.load %arg6[%c0_13, %c0_14] : memref<50x50xbf16, #tpu.memory_space<vmem>>, vector<50x50xbf16>
    %cst_15 = arith.constant dense<0.000000e+00> : vector<24x50xf32>
    %25 = tpu.matmul %16, %24, %cst_15 {dimension_numbers = #tpu.dot_dimension_numbers<[1], [0], [0], [1], [0, 0, 1, 1], [], []>} : vector<24x50xbf16>, vector<50x50xbf16>, vector<24x50xf32> -> vector<24x50xf32>
    %26 = arith.addf %23, %25 : vector<24x50xf32>
    %c0_16 = arith.constant 0 : index
    %c0_17 = arith.constant 0 : index
    %27 = vector.load %arg7[%c0_16, %c0_17] : memref<1x50xf32, #tpu.memory_space<vmem>>, vector<1x50xf32>
    %28 = vector.broadcast %27 : vector<1x50xf32> to vector<24x50xf32>
    %29 = arith.addf %26, %28 : vector<24x50xf32>
    %30 = math.tanh %29 : vector<24x50xf32>
    %31 = arith.truncf %30 : vector<24x50xf32> to vector<24x50xbf16>
    %32 = arith.extf %31 : vector<24x50xbf16> to vector<24x50xf32>
    %33 = arith.subf %30, %32 : vector<24x50xf32>
    %34 = arith.truncf %33 : vector<24x50xf32> to vector<24x50xbf16>
    %c0_18 = arith.constant 0 : index
    %c0_19 = arith.constant 0 : index
    %35 = vector.load %arg8[%c0_18, %c0_19] : memref<50x128xbf16, #tpu.memory_space<vmem>>, vector<50x128xbf16>
    %cst_20 = arith.constant dense<0.000000e+00> : vector<24x128xf32>
    %36 = tpu.matmul %31, %35, %cst_20 {dimension_numbers = #tpu.dot_dimension_numbers<[1], [0], [0], [1], [0, 0, 1, 1], [], []>} : vector<24x50xbf16>, vector<50x128xbf16>, vector<24x128xf32> -> vector<24x128xf32>
    %cst_21 = arith.constant dense<0.000000e+00> : vector<24x128xf32>
    %37 = tpu.matmul %34, %35, %cst_21 {dimension_numbers = #tpu.dot_dimension_numbers<[1], [0], [0], [1], [0, 0, 1, 1], [], []>} : vector<24x50xbf16>, vector<50x128xbf16>, vector<24x128xf32> -> vector<24x128xf32>
    %38 = arith.addf %36, %37 : vector<24x128xf32>
    %c0_22 = arith.constant 0 : index
    %c0_23 = arith.constant 0 : index
    %39 = vector.load %arg9[%c0_22, %c0_23] : memref<50x128xbf16, #tpu.memory_space<vmem>>, vector<50x128xbf16>
    %cst_24 = arith.constant dense<0.000000e+00> : vector<24x128xf32>
    %40 = tpu.matmul %31, %39, %cst_24 {dimension_numbers = #tpu.dot_dimension_numbers<[1], [0], [0], [1], [0, 0, 1, 1], [], []>} : vector<24x50xbf16>, vector<50x128xbf16>, vector<24x128xf32> -> vector<24x128xf32>
    %41 = arith.addf %38, %40 : vector<24x128xf32>
    %c0_25 = arith.constant 0 : index
    %c0_26 = arith.constant 0 : index
    %42 = vector.load %arg10[%c0_25, %c0_26] : memref<1x128xf32, #tpu.memory_space<vmem>>, vector<1x128xf32>
    %43 = vector.broadcast %42 : vector<1x128xf32> to vector<24x128xf32>
    %44 = arith.addf %41, %43 : vector<24x128xf32>
    %cst_27 = arith.constant 0.000000e+00 : f32
    %45 = vector.broadcast %cst_27 : f32 to vector<24x128xf32>
    %46 = arith.maximumf %44, %45 : vector<24x128xf32>
    %47 = arith.truncf %46 : vector<24x128xf32> to vector<24x128xbf16>
    %48 = arith.extf %47 : vector<24x128xbf16> to vector<24x128xf32>
    %49 = arith.subf %46, %48 : vector<24x128xf32>
    %50 = arith.truncf %49 : vector<24x128xf32> to vector<24x128xbf16>
    %c0_28 = arith.constant 0 : index
    %c0_29 = arith.constant 0 : index
    %51 = vector.load %arg11[%c0_28, %c0_29] : memref<128x10xbf16, #tpu.memory_space<vmem>>, vector<128x10xbf16>
    %cst_30 = arith.constant dense<0.000000e+00> : vector<24x10xf32>
    %52 = tpu.matmul %47, %51, %cst_30 {dimension_numbers = #tpu.dot_dimension_numbers<[1], [0], [0], [1], [0, 0, 1, 1], [], []>} : vector<24x128xbf16>, vector<128x10xbf16>, vector<24x10xf32> -> vector<24x10xf32>
    %cst_31 = arith.constant dense<0.000000e+00> : vector<24x10xf32>
    %53 = tpu.matmul %50, %51, %cst_31 {dimension_numbers = #tpu.dot_dimension_numbers<[1], [0], [0], [1], [0, 0, 1, 1], [], []>} : vector<24x128xbf16>, vector<128x10xbf16>, vector<24x10xf32> -> vector<24x10xf32>
    %54 = arith.addf %52, %53 : vector<24x10xf32>
    %c0_32 = arith.constant 0 : index
    %c0_33 = arith.constant 0 : index
    %55 = vector.load %arg12[%c0_32, %c0_33] : memref<128x10xbf16, #tpu.memory_space<vmem>>, vector<128x10xbf16>
    %cst_34 = arith.constant dense<0.000000e+00> : vector<24x10xf32>
    %56 = tpu.matmul %47, %55, %cst_34 {dimension_numbers = #tpu.dot_dimension_numbers<[1], [0], [0], [1], [0, 0, 1, 1], [], []>} : vector<24x128xbf16>, vector<128x10xbf16>, vector<24x10xf32> -> vector<24x10xf32>
    %57 = arith.addf %54, %56 : vector<24x10xf32>
    %c0_35 = arith.constant 0 : index
    %c0_36 = arith.constant 0 : index
    %58 = vector.load %arg13[%c0_35, %c0_36] : memref<1x10xf32, #tpu.memory_space<vmem>>, vector<1x10xf32>
    %59 = vector.broadcast %58 : vector<1x10xf32> to vector<24x10xf32>
    %60 = arith.addf %57, %59 : vector<24x10xf32>
    %cst_37 = arith.constant dense<0xFF800000> : vector<24xf32>
    %61 = vector.multi_reduction <maximumf>, %60, %cst_37 [1] : vector<24x10xf32> to vector<24xf32>
    %62 = vector.shape_cast %61 : vector<24xf32> to vector<24x1xf32>
    %63 = vector.broadcast %62 : vector<24x1xf32> to vector<24x10xf32>
    %64 = arith.subf %60, %63 : vector<24x10xf32>
    %65 = math.exp %64 : vector<24x10xf32>
    %cst_38 = arith.constant dense<0.000000e+00> : vector<24xf32>
    %66 = vector.multi_reduction <add>, %65, %cst_38 [1] : vector<24x10xf32> to vector<24xf32>
    %67 = vector.shape_cast %66 : vector<24xf32> to vector<24x1xf32>
    %68 = math.log %67 : vector<24x1xf32>
    %69 = vector.broadcast %68 : vector<24x1xf32> to vector<24x10xf32>
    %70 = arith.subf %64, %69 : vector<24x10xf32>
    %c0_39 = arith.constant 0 : index
    %c0_40 = arith.constant 0 : index
    %71 = vector.load %arg14[%c0_39, %c0_40] : memref<24x10xf32, #tpu.memory_space<vmem>>, vector<24x10xf32>
    tpu.vector_store %arg14[%c0_39, %c0_40], %70 {strides = array<i32>} : memref<24x10xf32, #tpu.memory_space<vmem>>, vector<24x10xf32>,
    return
  }
  func.func @transform_0(%arg0: i32) -> (i32, i32) {
    %c0_i32 = arith.constant 0 : i32
    %c0_i32_0 = arith.constant 0 : i32
    return %arg0, %c0_i32 : i32, i32
  }
  func.func @transform_1(%arg0: i32) -> (i32, i32) {
    %c0_i32 = arith.constant 0 : i32
    %c0_i32_0 = arith.constant 0 : i32
    %c0_i32_1 = arith.constant 0 : i32
    return %c0_i32, %c0_i32_0 : i32, i32
  }
  func.func @transform_2(%arg0: i32) -> (i32, i32) {
    %c0_i32 = arith.constant 0 : i32
    %c0_i32_0 = arith.constant 0 : i32
    %c0_i32_1 = arith.constant 0 : i32
    return %c0_i32, %c0_i32_0 : i32, i32
  }
  func.func @transform_3(%arg0: i32) -> (i32, i32) {
    %c0_i32 = arith.constant 0 : i32
    %c0_i32_0 = arith.constant 0 : i32
    %c0_i32_1 = arith.constant 0 : i32
    return %c0_i32, %c0_i32_0 : i32, i32
  }
  func.func @transform_4(%arg0: i32) -> (i32, i32) {
    %c0_i32 = arith.constant 0 : i32
    %c0_i32_0 = arith.constant 0 : i32
    %c0_i32_1 = arith.constant 0 : i32
    return %c0_i32, %c0_i32_0 : i32, i32
  }
  func.func @transform_5(%arg0: i32) -> (i32, i32) {
    %c0_i32 = arith.constant 0 : i32
    %c0_i32_0 = arith.constant 0 : i32
    %c0_i32_1 = arith.constant 0 : i32
    return %c0_i32, %c0_i32_0 : i32, i32
  }
  func.func @transform_6(%arg0: i32) -> (i32, i32) {
    %c0_i32 = arith.constant 0 : i32
    %c0_i32_0 = arith.constant 0 : i32
    %c0_i32_1 = arith.constant 0 : i32
    return %c0_i32, %c0_i32_0 : i32, i32
  }
  func.func @transform_7(%arg0: i32) -> (i32, i32) {
    %c0_i32 = arith.constant 0 : i32
    %c0_i32_0 = arith.constant 0 : i32
    %c0_i32_1 = arith.constant 0 : i32
    return %c0_i32, %c0_i32_0 : i32, i32
  }
  func.func @transform_8(%arg0: i32) -> (i32, i32) {
    %c0_i32 = arith.constant 0 : i32
    %c0_i32_0 = arith.constant 0 : i32
    %c0_i32_1 = arith.constant 0 : i32
    return %c0_i32, %c0_i32_0 : i32, i32
  }
  func.func @transform_9(%arg0: i32) -> (i32, i32) {
    %c0_i32 = arith.constant 0 : i32
    %c0_i32_0 = arith.constant 0 : i32
    %c0_i32_1 = arith.constant 0 : i32
    return %c0_i32, %c0_i32_0 : i32, i32
  }
  func.func @transform_10(%arg0: i32) -> (i32, i32) {
    %c0_i32 = arith.constant 0 : i32
    %c0_i32_0 = arith.constant 0 : i32
    %c0_i32_1 = arith.constant 0 : i32
    return %c0_i32, %c0_i32_0 : i32, i32
  }
  func.func @transform_11(%arg0: i32) -> (i32, i32) {
    %c0_i32 = arith.constant 0 : i32
    %c0_i32_0 = arith.constant 0 : i32
    %c0_i32_1 = arith.constant 0 : i32
    return %c0_i32, %c0_i32_0 : i32, i32
  }
  func.func @transform_12(%arg0: i32) -> (i32, i32) {
    %c0_i32 = arith.constant 0 : i32
    %c0_i32_0 = arith.constant 0 : i32
    %c0_i32_1 = arith.constant 0 : i32
    return %c0_i32, %c0_i32_0 : i32, i32
  }
  func.func @transform_13(%arg0: i32) -> (i32, i32) {
    %c0_i32 = arith.constant 0 : i32
    %c0_i32_0 = arith.constant 0 : i32
    return %arg0, %c0_i32 : i32, i32
  }
}

</mosaic_0001>

<llo_original>
// kernel: tpu_custom_call.1
$region0: #{tpu_custom_call.1}
  #allocation0 [shape = 'u32[]', space=smem, size = 0x4, offset = 0x4, fixed_abs, tag = 'smem constant byte address 0x4 - core index']
  #allocation1 [shape = 'u32[144,128]{1,0:T(1,128)}', space=vmem, size = 0x12000, scoped, tag = 'internal scratch']
  %s0 = inlined_call_operand.vmem [shape: f32[37,784], index: 0, kind: input, shape index: {}]
  %s1 = inlined_call_operand.vmem [shape: bf16[784,50], index: 1, kind: input, shape index: {}]
  %s2 = inlined_call_operand.vmem [shape: bf16[784,50], index: 2, kind: input, shape index: {}]
  %s3 = inlined_call_operand.vmem [shape: f32[1,50], index: 3, kind: input, shape index: {}]
  %s4 = inlined_call_operand.vmem [shape: bf16[50,50], index: 4, kind: input, shape index: {}]
  %s5 = inlined_call_operand.vmem [shape: bf16[50,50], index: 5, kind: input, shape index: {}]
  %s6 = inlined_call_operand.vmem [shape: f32[1,50], index: 6, kind: input, shape index: {}]
  %s7 = inlined_call_operand.vmem [shape: bf16[50,128], index: 7, kind: input, shape index: {}]
  %s8 = inlined_call_operand.vmem [shape: bf16[50,128], index: 8, kind: input, shape index: {}]
  %s9 = inlined_call_operand.vmem [shape: f32[1,128], index: 9, kind: input, shape index: {}]
  %s10 = inlined_call_operand.vmem [shape: bf16[128,10], index: 10, kind: input, shape index: {}]
  %s11 = inlined_call_operand.vmem [shape: bf16[128,10], index: 11, kind: input, shape index: {}]
  %s12 = inlined_call_operand.vmem [shape: f32[1,10], index: 12, kind: input, shape index: {}]
  %s13 = inlined_call_operand.vmem [shape: f32[37,10], index: 13, kind: output, shape index: {}]
  %s14 = sld [smem:[#allocation0]]
  $region133: #{tpu_custom_call.1} parent=0
    _
  %s16 = ssub.s32 1, %s14
  %s17 = scalar_select 0, %s16, %s14
  $region1: #{tpu_custom_call.1} parent=0
    #allocation2 [shape = 'u8[24576]{0}', space=vmem, size = 0x6000, scoped, tag = 'output window, operand 0']
    loop: start=0, step=1, limit=4
    $region2: #{tpu_custom_call.1} parent=1 // loop_pre_header
      _
    $region3: #{tpu_custom_call.1} parent=1 // loop_header
      %s19 = sphi 0, %s23
      %p20 = scmp.ge.s32.totalorder %s19, 4
      %s29 = sphi 0, %s31
      %s32 = sphi 0, %s29
      %s33 = sphi 0, %s32
      %s49 = sphi 0, %s33
      %s53 = sphi 0, %s53
      %s55 = sphi 0, %s53
      %s56 = sphi 0, %s55
      %s70 = sphi 0, %s56
      %s74 = sphi 0, %s74
      %s76 = sphi 0, %s74
      %s77 = sphi 0, %s76
      %s91 = sphi 0, %s77
      %s95 = sphi 0, %s95
      %s97 = sphi 0, %s95
      %s98 = sphi 0, %s97
      %s112 = sphi 0, %s98
      %s116 = sphi 0, %s116
      %s118 = sphi 0, %s116
      %s119 = sphi 0, %s118
      %s133 = sphi 0, %s119
      %s137 = sphi 0, %s137
      %s139 = sphi 0, %s137
      %s140 = sphi 0, %s139
      %s154 = sphi 0, %s140
      %s158 = sphi 0, %s158
      %s160 = sphi 0, %s158
      %s161 = sphi 0, %s160
      %s175 = sphi 0, %s161
      %s179 = sphi 0, %s179
      %s181 = sphi 0, %s179
      %s182 = sphi 0, %s181
      %s196 = sphi 0, %s182
      %s200 = sphi 0, %s200
      %s202 = sphi 0, %s200
      %s203 = sphi 0, %s202
      %s217 = sphi 0, %s203
      %s221 = sphi 0, %s221
      %s223 = sphi 0, %s221
      %s224 = sphi 0, %s223
      %s238 = sphi 0, %s224
      %s242 = sphi 0, %s242
      %s244 = sphi 0, %s242
      %s245 = sphi 0, %s244
      %s259 = sphi 0, %s245
      %s263 = sphi 0, %s263
      %s265 = sphi 0, %s263
      %s266 = sphi 0, %s265
      %s280 = sphi 0, %s266
      %s284 = sphi 0, %s284
      %s286 = sphi 0, %s284
      %s287 = sphi 0, %s286
      %s301 = sphi 0, %s287
      %s307 = sphi 0, %s309
      %s310 = sphi 0, %s307
      %s311 = sphi 0, %s310
      %s327 = sphi 0, %s311
    $region4: #{tpu_custom_call.1} parent=1 // loop_header_branch
      %22 = sbr.rel (%p20) target = $region8
    $region5: #{tpu_custom_call.1} parent=1 // loop_body
      %s24 = ssub.s32 %s19, 1
      %s25 = ssub.s32 %s19, 2
      %s26 = sadd.s32 %s19, 1
      %s27 = ssub.s32 %s19, %s26
      %p28 = scmp.eq.s32.totalorder %s27, 0
      %s30 = sadd.s32 %s29, 1
      %s31 = scalar_select %p28, %s29, %s30
      %p34 = pneg %p28
      %p35 = scmp.eq.s32.totalorder %s19, 1
      %p36 = por %p34, %p35
      %p37 = scmp.ne.s32.totalorder %s29, %s32
      %p38 = scmp.eq.s32.totalorder %s19, 0
      %p39 = por %p37, %p38
      %p40 = scmp.ne.s32.totalorder %s29, %s32
      %p41 = scmp.eq.s32.totalorder %s24, 1
      %p42 = por %p40, %p41
      %p43 = scmp.ne.s32.totalorder %s32, %s33
      %p44 = scmp.eq.s32.totalorder %s24, 0
      %p45 = por %p43, %p44
      %p46 = scmp.ne.s32.totalorder %s32, %s33
      %p47 = scmp.eq.s32.totalorder %s25, 1
      %p48 = por %p46, %p47
      %p50 = scmp.ne.s32.totalorder %s33, %s49
      %p51 = scmp.eq.s32.totalorder %s25, 0
      %p52 = por %p50, %p51
      %s54 = sadd.s32 %s53, 1
      %p57 = scmp.eq.s32.totalorder %s19, 1
      %p58 = scmp.ne.s32.totalorder %s53, %s55
      %p59 = scmp.eq.s32.totalorder %s19, 0
      %p60 = por %p58, %p59
      %p61 = scmp.ne.s32.totalorder %s53, %s55
      %p62 = scmp.eq.s32.totalorder %s24, 1
      %p63 = por %p61, %p62
      %p64 = scmp.ne.s32.totalorder %s55, %s56
      %p65 = scmp.eq.s32.totalorder %s24, 0
      %p66 = por %p64, %p65
      %p67 = scmp.ne.s32.totalorder %s55, %s56
      %p68 = scmp.eq.s32.totalorder %s25, 1
      %p69 = por %p67, %p68
      %p71 = scmp.ne.s32.totalorder %s56, %s70
      %p72 = scmp.eq.s32.totalorder %s25, 0
      %p73 = por %p71, %p72
      %s75 = sadd.s32 %s74, 1
      %p78 = scmp.eq.s32.totalorder %s19, 1
      %p79 = scmp.ne.s32.totalorder %s74, %s76
      %p80 = scmp.eq.s32.totalorder %s19, 0
      %p81 = por %p79, %p80
      %p82 = scmp.ne.s32.totalorder %s74, %s76
      %p83 = scmp.eq.s32.totalorder %s24, 1
      %p84 = por %p82, %p83
      %p85 = scmp.ne.s32.totalorder %s76, %s77
      %p86 = scmp.eq.s32.totalorder %s24, 0
      %p87 = por %p85, %p86
      %p88 = scmp.ne.s32.totalorder %s76, %s77
      %p89 = scmp.eq.s32.totalorder %s25, 1
      %p90 = por %p88, %p89
      %p92 = scmp.ne.s32.totalorder %s77, %s91
      %p93 = scmp.eq.s32.totalorder %s25, 0
      %p94 = por %p92, %p93
      %s96 = sadd.s32 %s95, 1
      %p99 = scmp.eq.s32.totalorder %s19, 1
      %p100 = scmp.ne.s32.totalorder %s95, %s97
      %p101 = scmp.eq.s32.totalorder %s19, 0
      %p102 = por %p100, %p101
      %p103 = scmp.ne.s32.totalorder %s95, %s97
      %p104 = scmp.eq.s32.totalorder %s24, 1
      %p105 = por %p103, %p104
      %p106 = scmp.ne.s32.totalorder %s97, %s98
      %p107 = scmp.eq.s32.totalorder %s24, 0
      %p108 = por %p106, %p107
      %p109 = scmp.ne.s32.totalorder %s97, %s98
      %p110 = scmp.eq.s32.totalorder %s25, 1
      %p111 = por %p109, %p110
      %p113 = scmp.ne.s32.totalorder %s98, %s112
      %p114 = scmp.eq.s32.totalorder %s25, 0
      %p115 = por %p113, %p114
      %s117 = sadd.s32 %s116, 1
      %p120 = scmp.eq.s32.totalorder %s19, 1
      %p121 = scmp.ne.s32.totalorder %s116, %s118
      %p122 = scmp.eq.s32.totalorder %s19, 0
      %p123 = por %p121, %p122
      %p124 = scmp.ne.s32.totalorder %s116, %s118
      %p125 = scmp.eq.s32.totalorder %s24, 1
      %p126 = por %p124, %p125
      %p127 = scmp.ne.s32.totalorder %s118, %s119
      %p128 = scmp.eq.s32.totalorder %s24, 0
      %p129 = por %p127, %p128
      %p130 = scmp.ne.s32.totalorder %s118, %s119
      %p131 = scmp.eq.s32.totalorder %s25, 1
      %p132 = por %p130, %p131
      %p134 = scmp.ne.s32.totalorder %s119, %s133
      %p135 = scmp.eq.s32.totalorder %s25, 0
      %p136 = por %p134, %p135
      %s138 = sadd.s32 %s137, 1
      %p141 = scmp.eq.s32.totalorder %s19, 1
      %p142 = scmp.ne.s32.totalorder %s137, %s139
      %p143 = scmp.eq.s32.totalorder %s19, 0
      %p144 = por %p142, %p143
      %p145 = scmp.ne.s32.totalorder %s137, %s139
      %p146 = scmp.eq.s32.totalorder %s24, 1
      %p147 = por %p145, %p146
      %p148 = scmp.ne.s32.totalorder %s139, %s140
      %p149 = scmp.eq.s32.totalorder %s24, 0
      %p150 = por %p148, %p149
      %p151 = scmp.ne.s32.totalorder %s139, %s140
      %p152 = scmp.eq.s32.totalorder %s25, 1
      %p153 = por %p151, %p152
      %p155 = scmp.ne.s32.totalorder %s140, %s154
      %p156 = scmp.eq.s32.totalorder %s25, 0
      %p157 = por %p155, %p156
      %s159 = sadd.s32 %s158, 1
      %p162 = scmp.eq.s32.totalorder %s19, 1
      %p163 = scmp.ne.s32.totalorder %s158, %s160
      %p164 = scmp.eq.s32.totalorder %s19, 0
      %p165 = por %p163, %p164
      %p166 = scmp.ne.s32.totalorder %s158, %s160
      %p167 = scmp.eq.s32.totalorder %s24, 1
      %p168 = por %p166, %p167
      %p169 = scmp.ne.s32.totalorder %s160, %s161
      %p170 = scmp.eq.s32.totalorder %s24, 0
      %p171 = por %p169, %p170
      %p172 = scmp.ne.s32.totalorder %s160, %s161
      %p173 = scmp.eq.s32.totalorder %s25, 1
      %p174 = por %p172, %p173
      %p176 = scmp.ne.s32.totalorder %s161, %s175
      %p177 = scmp.eq.s32.totalorder %s25, 0
      %p178 = por %p176, %p177
      %s180 = sadd.s32 %s179, 1
      %p183 = scmp.eq.s32.totalorder %s19, 1
      %p184 = scmp.ne.s32.totalorder %s179, %s181
      %p185 = scmp.eq.s32.totalorder %s19, 0
      %p186 = por %p184, %p185
      %p187 = scmp.ne.s32.totalorder %s179, %s181
      %p188 = scmp.eq.s32.totalorder %s24, 1
      %p189 = por %p187, %p188
      %p190 = scmp.ne.s32.totalorder %s181, %s182
      %p191 = scmp.eq.s32.totalorder %s24, 0
      %p192 = por %p190, %p191
      %p193 = scmp.ne.s32.totalorder %s181, %s182
      %p194 = scmp.eq.s32.totalorder %s25, 1
      %p195 = por %p193, %p194
      %p197 = scmp.ne.s32.totalorder %s182, %s196
      %p198 = scmp.eq.s32.totalorder %s25, 0
      %p199 = por %p197, %p198
      %s201 = sadd.s32 %s200, 1
      %p204 = scmp.eq.s32.totalorder %s19, 1
      %p205 = scmp.ne.s32.totalorder %s200, %s202
      %p206 = scmp.eq.s32.totalorder %s19, 0
      %p207 = por %p205, %p206
      %p208 = scmp.ne.s32.totalorder %s200, %s202
      %p209 = scmp.eq.s32.totalorder %s24, 1
      %p210 = por %p208, %p209
      %p211 = scmp.ne.s32.totalorder %s202, %s203
      %p212 = scmp.eq.s32.totalorder %s24, 0
      %p213 = por %p211, %p212
      %p214 = scmp.ne.s32.totalorder %s202, %s203
      %p215 = scmp.eq.s32.totalorder %s25, 1
      %p216 = por %p214, %p215
      %p218 = scmp.ne.s32.totalorder %s203, %s217
      %p219 = scmp.eq.s32.totalorder %s25, 0
      %p220 = por %p218, %p219
      %s222 = sadd.s32 %s221, 1
      %p225 = scmp.eq.s32.totalorder %s19, 1
      %p226 = scmp.ne.s32.totalorder %s221, %s223
      %p227 = scmp.eq.s32.totalorder %s19, 0
      %p228 = por %p226, %p227
      %p229 = scmp.ne.s32.totalorder %s221, %s223
      %p230 = scmp.eq.s32.totalorder %s24, 1
      %p231 = por %p229, %p230
      %p232 = scmp.ne.s32.totalorder %s223, %s224
      %p233 = scmp.eq.s32.totalorder %s24, 0
      %p234 = por %p232, %p233
      %p235 = scmp.ne.s32.totalorder %s223, %s224
      %p236 = scmp.eq.s32.totalorder %s25, 1
      %p237 = por %p235, %p236
      %p239 = scmp.ne.s32.totalorder %s224, %s238
      %p240 = scmp.eq.s32.totalorder %s25, 0
      %p241 = por %p239, %p240
      %s243 = sadd.s32 %s242, 1
      %p246 = scmp.eq.s32.totalorder %s19, 1
      %p247 = scmp.ne.s32.totalorder %s242, %s244
      %p248 = scmp.eq.s32.totalorder %s19, 0
      %p249 = por %p247, %p248
      %p250 = scmp.ne.s32.totalorder %s242, %s244
      %p251 = scmp.eq.s32.totalorder %s24, 1
      %p252 = por %p250, %p251
      %p253 = scmp.ne.s32.totalorder %s244, %s245
      %p254 = scmp.eq.s32.totalorder %s24, 0
      %p255 = por %p253, %p254
      %p256 = scmp.ne.s32.totalorder %s244, %s245
      %p257 = scmp.eq.s32.totalorder %s25, 1
      %p258 = por %p256, %p257
      %p260 = scmp.ne.s32.totalorder %s245, %s259
      %p261 = scmp.eq.s32.totalorder %s25, 0
      %p262 = por %p260, %p261
      %s264 = sadd.s32 %s263, 1
      %p267 = scmp.eq.s32.totalorder %s19, 1
      %p268 = scmp.ne.s32.totalorder %s263, %s265
      %p269 = scmp.eq.s32.totalorder %s19, 0
      %p270 = por %p268, %p269
      %p271 = scmp.ne.s32.totalorder %s263, %s265
      %p272 = scmp.eq.s32.totalorder %s24, 1
      %p273 = por %p271, %p272
      %p274 = scmp.ne.s32.totalorder %s265, %s266
      %p275 = scmp.eq.s32.totalorder %s24, 0
      %p276 = por %p274, %p275
      %p277 = scmp.ne.s32.totalorder %s265, %s266
      %p278 = scmp.eq.s32.totalorder %s25, 1
      %p279 = por %p277, %p278
      %p281 = scmp.ne.s32.totalorder %s266, %s280
      %p282 = scmp.eq.s32.totalorder %s25, 0
      %p283 = por %p281, %p282
      %s285 = sadd.s32 %s284, 1
      %p288 = scmp.eq.s32.totalorder %s19, 1
      %p289 = scmp.ne.s32.totalorder %s284, %s286
      %p290 = scmp.eq.s32.totalorder %s19, 0
      %p291 = por %p289, %p290
      %p292 = scmp.ne.s32.totalorder %s284, %s286
      %p293 = scmp.eq.s32.totalorder %s24, 1
      %p294 = por %p292, %p293
      %p295 = scmp.ne.s32.totalorder %s286, %s287
      %p296 = scmp.eq.s32.totalorder %s24, 0
      %p297 = por %p295, %p296
      %p298 = scmp.ne.s32.totalorder %s286, %s287
      %p299 = scmp.eq.s32.totalorder %s25, 1
      %p300 = por %p298, %p299
      %p302 = scmp.ne.s32.totalorder %s287, %s301
      %p303 = scmp.eq.s32.totalorder %s25, 0
      %p304 = por %p302, %p303
      %s305 = ssub.s32 %s19, %s26
      %p306 = scmp.eq.s32.totalorder %s305, 0
      %s308 = sadd.s32 %s307, 1
      %s309 = scalar_select %p306, %s307, %s308
      %p312 = pneg %p306
      %p313 = scmp.eq.s32.totalorder %s19, 1
      %p314 = por %p312, %p313
      %p315 = scmp.ne.s32.totalorder %s307, %s310
      %p316 = scmp.eq.s32.totalorder %s19, 0
      %p317 = por %p315, %p316
      %p318 = scmp.ne.s32.totalorder %s307, %s310
      %p319 = scmp.eq.s32.totalorder %s24, 1
      %p320 = por %p318, %p319
      %p321 = scmp.ne.s32.totalorder %s310, %s311
      %p322 = scmp.eq.s32.totalorder %s24, 0
      %p323 = por %p321, %p322
      %p324 = scmp.ne.s32.totalorder %s310, %s311
      %p325 = scmp.eq.s32.totalorder %s25, 1
      %p326 = por %p324, %p325
      %p328 = scmp.ne.s32.totalorder %s311, %s327
      %p329 = scmp.eq.s32.totalorder %s25, 0
      %p330 = por %p328, %p329
      %p331 = scmp.le.s32.totalorder 1, %s19
      %p332 = scmp.lt.s32.totalorder %s19, 3
      %p333 = pnand %p331, %p332
      %p334 = pneg %p333
      // Predicated region
      $region9: #{tpu_custom_call.1} parent=5 // pred_check
        _
      $region10: #{tpu_custom_call.1} parent=5 // pred_check_branch
        %336 = sbr.rel (%p333) target = $region12
      $region11: #{tpu_custom_call.1} parent=5 // pred_region
        %s337 = ssub.s32 %s19, 1
        // Predicated region
        $region13: #{tpu_custom_call.1} parent=11 // pred_check
          %p338 = pneg %p66
        $region14: #{tpu_custom_call.1} parent=11 // pred_check_branch
          %340 = sbr.rel (%p338) target = $region16
        $region15: #{tpu_custom_call.1} parent=11 // pred_region
          _
        $region16: #{tpu_custom_call.1} parent=11 // pred_fallthru
          _
        // Predicated region
        $region17: #{tpu_custom_call.1} parent=11 // pred_check
          %p341 = pneg %p87
        $region18: #{tpu_custom_call.1} parent=11 // pred_check_branch
          %343 = sbr.rel (%p341) target = $region20
        $region19: #{tpu_custom_call.1} parent=11 // pred_region
          _
        $region20: #{tpu_custom_call.1} parent=11 // pred_fallthru
          _
        // Predicated region
        $region21: #{tpu_custom_call.1} parent=11 // pred_check
          %p344 = pneg %p108
        $region22: #{tpu_custom_call.1} parent=11 // pred_check_branch
          %346 = sbr.rel (%p344) target = $region24
        $region23: #{tpu_custom_call.1} parent=11 // pred_region
          _
        $region24: #{tpu_custom_call.1} parent=11 // pred_fallthru
          _
        // Predicated region
        $region25: #{tpu_custom_call.1} parent=11 // pred_check
          %p347 = pneg %p129
        $region26: #{tpu_custom_call.1} parent=11 // pred_check_branch
          %349 = sbr.rel (%p347) target = $region28
        $region27: #{tpu_custom_call.1} parent=11 // pred_region
          _
        $region28: #{tpu_custom_call.1} parent=11 // pred_fallthru
          _
        // Predicated region
        $region29: #{tpu_custom_call.1} parent=11 // pred_check
          %p350 = pneg %p150
        $region30: #{tpu_custom_call.1} parent=11 // pred_check_branch
          %352 = sbr.rel (%p350) target = $region32
        $region31: #{tpu_custom_call.1} parent=11 // pred_region
          _
        $region32: #{tpu_custom_call.1} parent=11 // pred_fallthru
          _
        // Predicated region
        $region33: #{tpu_custom_call.1} parent=11 // pred_check
          %p353 = pneg %p171
        $region34: #{tpu_custom_call.1} parent=11 // pred_check_branch
          %355 = sbr.rel (%p353) target = $region36
        $region35: #{tpu_custom_call.1} parent=11 // pred_region
          _
        $region36: #{tpu_custom_call.1} parent=11 // pred_fallthru
          _
        // Predicated region
        $region37: #{tpu_custom_call.1} parent=11 // pred_check
          %p356 = pneg %p192
        $region38: #{tpu_custom_call.1} parent=11 // pred_check_branch
          %358 = sbr.rel (%p356) target = $region40
        $region39: #{tpu_custom_call.1} parent=11 // pred_region
          _
        $region40: #{tpu_custom_call.1} parent=11 // pred_fallthru
          _
        // Predicated region
        $region41: #{tpu_custom_call.1} parent=11 // pred_check
          %p359 = pneg %p213
        $region42: #{tpu_custom_call.1} parent=11 // pred_check_branch
          %361 = sbr.rel (%p359) target = $region44
        $region43: #{tpu_custom_call.1} parent=11 // pred_region
          _
        $region44: #{tpu_custom_call.1} parent=11 // pred_fallthru
          _
        // Predicated region
        $region45: #{tpu_custom_call.1} parent=11 // pred_check
          %p362 = pneg %p234
        $region46: #{tpu_custom_call.1} parent=11 // pred_check_branch
          %364 = sbr.rel (%p362) target = $region48
        $region47: #{tpu_custom_call.1} parent=11 // pred_region
          _
        $region48: #{tpu_custom_call.1} parent=11 // pred_fallthru
          _
        // Predicated region
        $region49: #{tpu_custom_call.1} parent=11 // pred_check
          %p365 = pneg %p255
        $region50: #{tpu_custom_call.1} parent=11 // pred_check_branch
          %367 = sbr.rel (%p365) target = $region52
        $region51: #{tpu_custom_call.1} parent=11 // pred_region
          _
        $region52: #{tpu_custom_call.1} parent=11 // pred_fallthru
          _
        // Predicated region
        $region53: #{tpu_custom_call.1} parent=11 // pred_check
          %p368 = pneg %p276
        $region54: #{tpu_custom_call.1} parent=11 // pred_check_branch
          %370 = sbr.rel (%p368) target = $region56
        $region55: #{tpu_custom_call.1} parent=11 // pred_region
          _
        $region56: #{tpu_custom_call.1} parent=11 // pred_fallthru
          _
        // Predicated region
        $region57: #{tpu_custom_call.1} parent=11 // pred_check
          %p371 = pneg %p297
        $region58: #{tpu_custom_call.1} parent=11 // pred_check_branch
          %373 = sbr.rel (%p371) target = $region60
        $region59: #{tpu_custom_call.1} parent=11 // pred_region
          _
        $region60: #{tpu_custom_call.1} parent=11 // pred_fallthru
          _
      $region12: #{tpu_custom_call.1} parent=5 // pred_fallthru
        _
      %p374 = scmp.lt.s32.totalorder %s19, 2
      // Predicated region
      $region61: #{tpu_custom_call.1} parent=5 // pred_check
        %p375 = pneg %p374
      $region62: #{tpu_custom_call.1} parent=5 // pred_check_branch
        %377 = sbr.rel (%p375) target = $region64
      $region63: #{tpu_custom_call.1} parent=5 // pred_region
        // Predicated region
        $region65: #{tpu_custom_call.1} parent=63 // pred_check
          %p378 = pneg %p39
        $region66: #{tpu_custom_call.1} parent=63 // pred_check_branch
          %380 = sbr.rel (%p378) target = $region68
        $region67: #{tpu_custom_call.1} parent=63 // pred_region
          %s381 = smul.u32 3, %s19
          %s382 = ssub.s32 5, %s381
          %p383 = scmp.lt.s32.totalorder %s382, 3
          %s384 = scalar_select %p383, %s382, 3
          %s385 = smul.u32 128, %s384
          %s386 = smul.u32 %s385, 7
          %p387 = scmp.lt.s32.totalorder %s381, 4
          %s388 = scalar_select %p387, %s381, 4
          %s389 = smul.addr %s388, 7
          %s390 = smul.addr %s389, 8
          %s391 = scalar_lea.vmem %s0, %s390
          %s392 = smul.u32 3, %s19
          %s393 = ssub.s32 5, %s392
          %p394 = scmp.lt.s32.totalorder %s393, 3
          %s395 = scalar_select %p394, %s393, 3
          %s396 = smul.u32 128, %s395
          %s397 = smul.u32 %s396, 7
        $region68: #{tpu_custom_call.1} parent=63 // pred_fallthru
          _
      $region64: #{tpu_custom_call.1} parent=5 // pred_fallthru
        _
      %p398 = scmp.le.s32.totalorder 1, %s19
      %p399 = scmp.lt.s32.totalorder %s19, 3
      %p400 = pnand %p398, %p399
      %p401 = pneg %p400
      // Predicated region
      $region69: #{tpu_custom_call.1} parent=5 // pred_check
        _
      $region70: #{tpu_custom_call.1} parent=5 // pred_check_branch
        %403 = sbr.rel (%p400) target = $region72
      $region71: #{tpu_custom_call.1} parent=5 // pred_region
        %s404 = ssub.s32 %s19, 1
        %s405 = smul.u32 3, %s24
        %s406 = ssub.s32 5, %s405
        %p407 = scmp.lt.s32.totalorder %s406, 3
        %s408 = scalar_select %p407, %s406, 3
        %s409 = smul.u32 128, %s408
        %s410 = smul.u32 %s409, 7
        %p411 = scmp.lt.s32.totalorder %s405, 4
        %s412 = scalar_select %p411, %s405, 4
        %s413 = smul.addr %s412, 7
        %s414 = smul.addr %s413, 8
        %s415 = scalar_lea.vmem %s0, %s414
        %p416 = pneg %p45
        %p417 = pneg %p42
        %p418 = pneg %p66
        %p419 = pneg %p63
        %p420 = pneg %p87
        %p421 = pneg %p84
        %p422 = pneg %p108
        %p423 = pneg %p105
        %p424 = pneg %p129
        %p425 = pneg %p126
        %p426 = pneg %p150
        %p427 = pneg %p147
        %p428 = pneg %p171
        %p429 = pneg %p168
        %p430 = pneg %p192
        %p431 = pneg %p189
        %p432 = pneg %p213
        %p433 = pneg %p210
        %p434 = pneg %p234
        %p435 = pneg %p231
        %p436 = pneg %p255
        %p437 = pneg %p252
        %p438 = pneg %p276
        %p439 = pneg %p273
        %p440 = pneg %p297
        %p441 = pneg %p294
        %p442 = pneg %p323
        %p443 = pneg %p320
        %s444 = sand.u32 %s310, 1
        %s445 = sand.u32 %s310, 1
        %s446 = smul.addr %s445, 24
        %s447 = scalar_lea.vmem [#allocation2], %s446
        %s448 = smul.u32 3, %s24
        %s449 = ssub.s32 5, %s448
        %p450 = scmp.lt.s32.totalorder %s449, 3
        %s451 = scalar_select %p450, %s449, 3
        %s452 = smul.u32 128, %s451
        %s453 = smul.u32 %s452, 7
        %p454 = scmp.lt.s32.totalorder %s448, 4
        %s455 = scalar_select %p454, %s448, 4
        %s456 = smul.addr %s455, 7
        %s457 = smul.addr %s456, 8
        %s458 = scalar_lea.vmem %s0, %s457
        %s459 = smul.u32 3, %s24
        %s460 = ssub.s32 5, %s459
        %p461 = scmp.lt.s32.totalorder %s460, 3
        %s462 = scalar_select %p461, %s460, 3
        %s463 = smul.u32 128, %s462
        %s464 = smul.u32 %s463, 7
        %s465 = smul.u32 3, %s24
        %s466 = ssub.s32 5, %s465
        %p467 = scmp.lt.s32.totalorder %s466, 3
        %s468 = scalar_select %p467, %s466, 3
        %s469 = smul.u32 128, %s468
        %v471 = vld [vmem:[%s458] sm:$0xff]
        %v472 = vld [vmem:[%s458 + $0x8] sm:$0xff]
        %v473 = vld [vmem:[%s458 + $0x10] sm:$0xff]
        %v474 = vld [vmem:[%s458 + $0x18] sm:$0xff]
        %v475 = vld [vmem:[%s458 + $0x20] sm:$0xff]
        %v476 = vld [vmem:[%s458 + $0x28] sm:$0xff]
        %v477 = vld [vmem:[%s458 + $0x30] sm:$0xff]
        %v478 = vld [vmem:[%s458 + $0x38] sm:$0xff]
        %v479 = vld [vmem:[%s458 + $0x40] sm:$0xff]
        %v480 = vld [vmem:[%s458 + $0x48] sm:$0xff]
        %v481 = vld [vmem:[%s458 + $0x50] sm:$0xff]
        %v482 = vld [vmem:[%s458 + $0x58] sm:$0xff]
        %v483 = vld [vmem:[%s458 + $0x60] sm:$0xff]
        %v484 = vld [vmem:[%s458 + $0x68] sm:$0xff]
        %v485 = vld [vmem:[%s458 + $0x70] sm:$0xff]
        %v486 = vld [vmem:[%s458 + $0x78] sm:$0xff]
        %v487 = vld [vmem:[%s458 + $0x80] sm:$0xff]
        %v488 = vld [vmem:[%s458 + $0x88] sm:$0xff]
        %v489 = vld [vmem:[%s458 + $0x90] sm:$0xff]
        %v490 = vld [vmem:[%s458 + $0x98] sm:$0xff]
        %v491 = vld [vmem:[%s458 + $0xa0] sm:$0xff]
        %v492 = vpack.c.bf16 %v478, %v471
        %v493 = vpack.c.bf16 %v479, %v472
        %v494 = vpack.c.bf16 %v480, %v473
        %v495 = vpack.c.bf16 %v481, %v474
        %v496 = vpack.c.bf16 %v482, %v475
        %v497 = vpack.c.bf16 %v483, %v476
        %v498 = vpack.c.bf16 %v484, %v477
        %v499 = vpack.c.bf16 %v485, %v485
        %v500 = vpack.c.bf16 %v486, %v486
        %v501 = vpack.c.bf16 %v487, %v487
        %v502 = vpack.c.bf16 %v488, %v488
        %v503 = vpack.c.bf16 %v489, %v489
        %v504 = vpack.c.bf16 %v490, %v490
        %v505 = vpack.c.bf16 %v491, %v491
        %v506 = vunpack.c.l.bf16 %v492
        %v507 = vunpack.c.l.bf16 %v493
        %v508 = vunpack.c.l.bf16 %v494
        %v509 = vunpack.c.l.bf16 %v495
        %v510 = vunpack.c.l.bf16 %v496
        %v511 = vunpack.c.l.bf16 %v497
        %v512 = vunpack.c.l.bf16 %v498
        %v513 = vunpack.c.h.bf16 %v492
        %v514 = vunpack.c.h.bf16 %v493
        %v515 = vunpack.c.h.bf16 %v494
        %v516 = vunpack.c.h.bf16 %v495
        %v517 = vunpack.c.h.bf16 %v496
        %v518 = vunpack.c.h.bf16 %v497
        %v519 = vunpack.c.h.bf16 %v498
        %v520 = vunpack.c.l.bf16 %v499
        %v521 = vunpack.c.l.bf16 %v500
        %v522 = vunpack.c.l.bf16 %v501
        %v523 = vunpack.c.l.bf16 %v502
        %v524 = vunpack.c.l.bf16 %v503
        %v525 = vunpack.c.l.bf16 %v504
        %v526 = vunpack.c.l.bf16 %v505
        %v527 = vsub.f32 %v471, %v506
        %v528 = vsub.f32 %v472, %v507
        %v529 = vsub.f32 %v473, %v508
        %v530 = vsub.f32 %v474, %v509
        %v531 = vsub.f32 %v475, %v510
        %v532 = vsub.f32 %v476, %v511
        %v533 = vsub.f32 %v477, %v512
        %v534 = vsub.f32 %v478, %v513
        %v535 = vsub.f32 %v479, %v514
        %v536 = vsub.f32 %v480, %v515
        %v537 = vsub.f32 %v481, %v516
        %v538 = vsub.f32 %v482, %v517
        %v539 = vsub.f32 %v483, %v518
        %v540 = vsub.f32 %v484, %v519
        %v541 = vsub.f32 %v485, %v520
        %v542 = vsub.f32 %v486, %v521
        %v543 = vsub.f32 %v487, %v522
        %v544 = vsub.f32 %v488, %v523
        %v545 = vsub.f32 %v489, %v524
        %v546 = vsub.f32 %v490, %v525
        %v547 = vsub.f32 %v491, %v526
        %v548 = vpack.c.bf16 %v534, %v527
        %v549 = vpack.c.bf16 %v535, %v528
        %v550 = vpack.c.bf16 %v536, %v529
        %v551 = vpack.c.bf16 %v537, %v530
        %v552 = vpack.c.bf16 %v538, %v531
        %v553 = vpack.c.bf16 %v539, %v532
        %v554 = vpack.c.bf16 %v540, %v533
        %v555 = vpack.c.bf16 %v541, %v541
        %v556 = vpack.c.bf16 %v542, %v542
        %v557 = vpack.c.bf16 %v543, %v543
        %v558 = vpack.c.bf16 %v544, %v544
        %v559 = vpack.c.bf16 %v545, %v545
        %v560 = vpack.c.bf16 %v546, %v546
        %v561 = vpack.c.bf16 %v547, %v547
        %v562 = vld [vmem:[%s1] sm:$0xf]
        %v563 = vld [vmem:[%s1 + $0x4] sm:$0xf]
        %v564 = vld [vmem:[%s1 + $0x8] sm:$0xf]
        %v565 = vld [vmem:[%s1 + $0xc] sm:$0xf]
        %v566 = vld [vmem:[%s1 + $0x10] sm:$0xf]
        %v567 = vld [vmem:[%s1 + $0x14] sm:$0xf]
        %v568 = vld [vmem:[%s1 + $0x18] sm:$0xf]
        %v569 = vld [vmem:[%s1 + $0x1c] sm:$0xf]
        %v570 = vld [vmem:[%s1 + $0x20] sm:$0xf]
        %v571 = vld [vmem:[%s1 + $0x24] sm:$0xf]
        %v572 = vld [vmem:[%s1 + $0x28] sm:$0xf]
        %v573 = vld [vmem:[%s1 + $0x2c] sm:$0xf]
        %v574 = vld [vmem:[%s1 + $0x30] sm:$0xf]
        %v575 = vld [vmem:[%s1 + $0x34] sm:$0xf]
        %v576 = vld [vmem:[%s1 + $0x38] sm:$0xf]
        %v577 = vld [vmem:[%s1 + $0x3c] sm:$0xf]
        %v578 = vld [vmem:[%s1 + $0x40] sm:$0xf]
        %v579 = vld [vmem:[%s1 + $0x44] sm:$0xf]
        %v580 = vld [vmem:[%s1 + $0x48] sm:$0xf]
        %v581 = vld [vmem:[%s1 + $0x4c] sm:$0xf]
        %v582 = vld [vmem:[%s1 + $0x50] sm:$0xf]
        %v583 = vld [vmem:[%s1 + $0x54] sm:$0xf]
        %v584 = vld [vmem:[%s1 + $0x58] sm:$0xf]
        %v585 = vld [vmem:[%s1 + $0x5c] sm:$0xf]
        %v586 = vld [vmem:[%s1 + $0x60] sm:$0xf]
        %v587 = vld [vmem:[%s1 + $0x64] sm:$0xf]
        %v588 = vld [vmem:[%s1 + $0x68] sm:$0xf]
        %v589 = vld [vmem:[%s1 + $0x6c] sm:$0xf]
        %v590 = vld [vmem:[%s1 + $0x70] sm:$0xf]
        %v591 = vld [vmem:[%s1 + $0x74] sm:$0xf]
        %v592 = vld [vmem:[%s1 + $0x78] sm:$0xf]
        %v593 = vld [vmem:[%s1 + $0x7c] sm:$0xf]
        %v594 = vld [vmem:[%s1 + $0x80] sm:$0xf]
        %v595 = vld [vmem:[%s1 + $0x84] sm:$0xf]
        %v596 = vld [vmem:[%s1 + $0x88] sm:$0xf]
        %v597 = vld [vmem:[%s1 + $0x8c] sm:$0xf]
        %v598 = vld [vmem:[%s1 + $0x90] sm:$0xf]
        %v599 = vld [vmem:[%s1 + $0x94] sm:$0xf]
        %v600 = vld [vmem:[%s1 + $0x98] sm:$0xf]
        %v601 = vld [vmem:[%s1 + $0x9c] sm:$0xf]
        %v602 = vld [vmem:[%s1 + $0xa0] sm:$0xf]
        %v603 = vld [vmem:[%s1 + $0xa4] sm:$0xf]
        %v604 = vld [vmem:[%s1 + $0xa8] sm:$0xf]
        %v605 = vld [vmem:[%s1 + $0xac] sm:$0xf]
        %v606 = vld [vmem:[%s1 + $0xb0] sm:$0xf]
        %v607 = vld [vmem:[%s1 + $0xb4] sm:$0xf]
        %v608 = vld [vmem:[%s1 + $0xb8] sm:$0xf]
        %v609 = vld [vmem:[%s1 + $0xbc] sm:$0xf]
        %v610 = vld [vmem:[%s1 + $0xc0] sm:$0xf]
        %v611 = vld [vmem:[%s1 + $0xc4] sm:$0xf]
        %v612 = vld [vmem:[%s1 + $0xc8] sm:$0xf]
        %v613 = vld [vmem:[%s1 + $0xcc] sm:$0xf]
        %v614 = vld [vmem:[%s1 + $0xd0] sm:$0xf]
        %v615 = vld [vmem:[%s1 + $0xd4] sm:$0xf]
        %v616 = vld [vmem:[%s1 + $0xd8] sm:$0xf]
        %v617 = vld [vmem:[%s1 + $0xdc] sm:$0xf]
        %v618 = vld [vmem:[%s1 + $0xe0] sm:$0xf]
        %v619 = vld [vmem:[%s1 + $0xe4] sm:$0xf]
        %v620 = vld [vmem:[%s1 + $0xe8] sm:$0xf]
        %v621 = vld [vmem:[%s1 + $0xec] sm:$0xf]
        %v622 = vld [vmem:[%s1 + $0xf0] sm:$0xf]
        %v623 = vld [vmem:[%s1 + $0xf4] sm:$0xf]
        %v624 = vld [vmem:[%s1 + $0xf8] sm:$0xf]
        %v625 = vld [vmem:[%s1 + $0xfc] sm:$0xf]
        %v626 = vld [vmem:[%s1 + $0x100] sm:$0xf]
        %v627 = vld [vmem:[%s1 + $0x104] sm:$0xf]
        %v628 = vld [vmem:[%s1 + $0x108] sm:$0xf]
        %v629 = vld [vmem:[%s1 + $0x10c] sm:$0xf]
        %v630 = vld [vmem:[%s1 + $0x110] sm:$0xf]
        %v631 = vld [vmem:[%s1 + $0x114] sm:$0xf]
        %v632 = vld [vmem:[%s1 + $0x118] sm:$0xf]
        %v633 = vld [vmem:[%s1 + $0x11c] sm:$0xf]
        %v634 = vld [vmem:[%s1 + $0x120] sm:$0xf]
        %v635 = vld [vmem:[%s1 + $0x124] sm:$0xf]
        %v636 = vld [vmem:[%s1 + $0x128] sm:$0xf]
        %v637 = vld [vmem:[%s1 + $0x12c] sm:$0xf]
        %v638 = vld [vmem:[%s1 + $0x130] sm:$0xf]
        %v639 = vld [vmem:[%s1 + $0x134] sm:$0xf]
        %v640 = vld [vmem:[%s1 + $0x138] sm:$0xf]
        %v641 = vld [vmem:[%s1 + $0x13c] sm:$0xf]
        %v642 = vld [vmem:[%s1 + $0x140] sm:$0xf]
        %v643 = vld [vmem:[%s1 + $0x144] sm:$0xf]
        %v644 = vld [vmem:[%s1 + $0x148] sm:$0xf]
        %v645 = vld [vmem:[%s1 + $0x14c] sm:$0xf]
        %v646 = vld [vmem:[%s1 + $0x150] sm:$0xf]
        %v647 = vld [vmem:[%s1 + $0x154] sm:$0xf]
        %v648 = vld [vmem:[%s1 + $0x158] sm:$0xf]
        %v649 = vld [vmem:[%s1 + $0x15c] sm:$0xf]
        %v650 = vld [vmem:[%s1 + $0x160] sm:$0xf]
        %v651 = vld [vmem:[%s1 + $0x164] sm:$0xf]
        %v652 = vld [vmem:[%s1 + $0x168] sm:$0xf]
        %v653 = vld [vmem:[%s1 + $0x16c] sm:$0xf]
        %v654 = vld [vmem:[%s1 + $0x170] sm:$0xf]
        %v655 = vld [vmem:[%s1 + $0x174] sm:$0xf]
        %v656 = vld [vmem:[%s1 + $0x178] sm:$0xf]
        %v657 = vld [vmem:[%s1 + $0x17c] sm:$0xf]
        %v658 = vld [vmem:[%s1 + $0x180] sm:$0xf]
        %v659 = vld [vmem:[%s1 + $0x184] sm:$0xf]
        %v758 = vunpack.c.l.b16 %v562
        %v759 = vunpack.c.l.b16 %v563
        %v760 = vunpack.c.l.b16 %v564
        %v761 = vunpack.c.l.b16 %v565
        %v762 = vunpack.c.l.b16 %v566
        %v763 = vunpack.c.l.b16 %v567
        %v764 = vunpack.c.l.b16 %v568
        %v765 = vunpack.c.l.b16 %v569
        %v766 = vunpack.c.l.b16 %v570
        %v767 = vunpack.c.l.b16 %v571
        %v768 = vunpack.c.l.b16 %v572
        %v769 = vunpack.c.l.b16 %v573
        %v770 = vunpack.c.l.b16 %v574
        %v771 = vunpack.c.l.b16 %v575
        %v772 = vunpack.c.l.b16 %v576
        %v773 = vunpack.c.l.b16 %v577
        %v774 = vunpack.c.l.b16 %v578
        %v775 = vunpack.c.l.b16 %v579
        %v776 = vunpack.c.l.b16 %v580
        %v777 = vunpack.c.l.b16 %v581
        %v778 = vunpack.c.l.b16 %v582
        %v779 = vunpack.c.l.b16 %v583
        %v780 = vunpack.c.l.b16 %v584
        %v781 = vunpack.c.l.b16 %v585
        %v782 = vunpack.c.l.b16 %v586
        %v783 = vunpack.c.l.b16 %v587
        %v784 = vunpack.c.l.b16 %v588
        %v785 = vunpack.c.l.b16 %v589
        %v786 = vunpack.c.l.b16 %v590
        %v787 = vunpack.c.l.b16 %v591
        %v788 = vunpack.c.l.b16 %v592
        %v789 = vunpack.c.l.b16 %v593
        %v790 = vunpack.c.l.b16 %v594
        %v791 = vunpack.c.l.b16 %v595
        %v792 = vunpack.c.l.b16 %v596
        %v793 = vunpack.c.l.b16 %v597
        %v794 = vunpack.c.l.b16 %v598
        %v795 = vunpack.c.l.b16 %v599
        %v796 = vunpack.c.l.b16 %v600
        %v797 = vunpack.c.l.b16 %v601
        %v798 = vunpack.c.l.b16 %v602
        %v799 = vunpack.c.l.b16 %v603
        %v800 = vunpack.c.l.b16 %v604
        %v801 = vunpack.c.l.b16 %v605
        %v802 = vunpack.c.l.b16 %v606
        %v803 = vunpack.c.l.b16 %v607
        %v804 = vunpack.c.l.b16 %v608
        %v805 = vunpack.c.l.b16 %v609
        %v806 = vunpack.c.l.b16 %v610
        %v807 = vunpack.c.l.b16 %v611
        %v808 = vunpack.c.l.b16 %v612
        %v809 = vunpack.c.l.b16 %v613
        %v810 = vunpack.c.l.b16 %v614
        %v811 = vunpack.c.l.b16 %v615
        %v812 = vunpack.c.l.b16 %v616
        %v813 = vunpack.c.l.b16 %v617
        %v814 = vunpack.c.l.b16 %v618
        %v815 = vunpack.c.l.b16 %v619
        %v816 = vunpack.c.l.b16 %v620
        %v817 = vunpack.c.l.b16 %v621
        %v818 = vunpack.c.l.b16 %v622
        %v819 = vunpack.c.l.b16 %v623
        %v820 = vunpack.c.l.b16 %v624
        %v821 = vunpack.c.l.b16 %v625
        %v822 = vunpack.c.l.b16 %v626
        %v823 = vunpack.c.l.b16 %v627
        %v824 = vunpack.c.l.b16 %v628
        %v825 = vunpack.c.l.b16 %v629
        %v826 = vunpack.c.l.b16 %v630
        %v827 = vunpack.c.l.b16 %v631
        %v828 = vunpack.c.l.b16 %v632
        %v829 = vunpack.c.l.b16 %v633
        %v830 = vunpack.c.l.b16 %v634
        %v831 = vunpack.c.l.b16 %v635
        %v832 = vunpack.c.l.b16 %v636
        %v833 = vunpack.c.l.b16 %v637
        %v834 = vunpack.c.l.b16 %v638
        %v835 = vunpack.c.l.b16 %v639
        %v836 = vunpack.c.l.b16 %v640
        %v837 = vunpack.c.l.b16 %v641
        %v838 = vunpack.c.l.b16 %v642
        %v839 = vunpack.c.l.b16 %v643
        %v840 = vunpack.c.l.b16 %v644
        %v841 = vunpack.c.l.b16 %v645
        %v842 = vunpack.c.l.b16 %v646
        %v843 = vunpack.c.l.b16 %v647
        %v844 = vunpack.c.l.b16 %v648
        %v845 = vunpack.c.l.b16 %v649
        %v846 = vunpack.c.l.b16 %v650
        %v847 = vunpack.c.l.b16 %v651
        %v848 = vunpack.c.l.b16 %v652
        %v849 = vunpack.c.l.b16 %v653
        %v850 = vunpack.c.l.b16 %v654
        %v851 = vunpack.c.l.b16 %v655
        %v852 = vunpack.c.l.b16 %v656
        %v853 = vunpack.c.l.b16 %v657
        %v854 = vunpack.c.l.b16 %v658
        %v855 = vunpack.c.l.b16 %v659
        %v856 = vpack.c.b16 %v759, %v758
        %v857 = vpack.c.b16 %v761, %v760
        %v858 = vpack.c.b16 %v763, %v762
        %v859 = vpack.c.b16 %v765, %v764
        %v860 = vpack.c.b16 %v767, %v766
        %v861 = vpack.c.b16 %v769, %v768
        %v862 = vpack.c.b16 %v771, %v770
        %v863 = vpack.c.b16 %v773, %v772
        %v864 = vpack.c.b16 %v775, %v774
        %v865 = vpack.c.b16 %v777, %v776
        %v866 = vpack.c.b16 %v779, %v778
        %v867 = vpack.c.b16 %v781, %v780
        %v868 = vpack.c.b16 %v783, %v782
        %v869 = vpack.c.b16 %v785, %v784
        %v870 = vpack.c.b16 %v787, %v786
        %v871 = vpack.c.b16 %v789, %v788
        %v872 = vpack.c.b16 %v791, %v790
        %v873 = vpack.c.b16 %v793, %v792
        %v874 = vpack.c.b16 %v795, %v794
        %v875 = vpack.c.b16 %v797, %v796
        %v876 = vpack.c.b16 %v799, %v798
        %v877 = vpack.c.b16 %v801, %v800
        %v878 = vpack.c.b16 %v803, %v802
        %v879 = vpack.c.b16 %v805, %v804
        %v880 = vpack.c.b16 %v807, %v806
        %v881 = vpack.c.b16 %v809, %v808
        %v882 = vpack.c.b16 %v811, %v810
        %v883 = vpack.c.b16 %v813, %v812
        %v884 = vpack.c.b16 %v815, %v814
        %v885 = vpack.c.b16 %v817, %v816
        %v886 = vpack.c.b16 %v819, %v818
        %v887 = vpack.c.b16 %v821, %v820
        %v888 = vpack.c.b16 %v823, %v822
        %v889 = vpack.c.b16 %v825, %v824
        %v890 = vpack.c.b16 %v827, %v826
        %v891 = vpack.c.b16 %v829, %v828
        %v892 = vpack.c.b16 %v831, %v830
        %v893 = vpack.c.b16 %v833, %v832
        %v894 = vpack.c.b16 %v835, %v834
        %v895 = vpack.c.b16 %v837, %v836
        %v896 = vpack.c.b16 %v839, %v838
        %v897 = vpack.c.b16 %v841, %v840
        %v898 = vpack.c.b16 %v843, %v842
        %v899 = vpack.c.b16 %v845, %v844
        %v900 = vpack.c.b16 %v847, %v846
        %v901 = vpack.c.b16 %v849, %v848
        %v902 = vpack.c.b16 %v851, %v850
        %v903 = vpack.c.b16 %v853, %v852
        %v904 = vpack.c.b16 %v855, %v854
        %vm954 = vcmask 130048
        %v956 = vsel %vm954, %v554, 0
        %v959 = vsel %vm954, %v561, 0
        %961 = vmatprep.subr.bf16.mxu0 0
        %962 = vmatpush1.bf16.msra.mxu0 %v856
        %963 = vmatprep.subr.bf16.mxu0 0
        %964 = vmatpush1.bf16.msra.mxu0 %v857
        %965 = vmatprep.subr.bf16.mxu0 0
        %966 = vmatpush1.bf16.msra.mxu0 %v858
        %967 = vmatprep.subr.bf16.mxu0 0
        %968 = vmatpush1.bf16.msra.mxu0 %v859
        %969 = vmatprep.subr.bf16.mxu0 0
        %970 = vmatpush1.bf16.msra.mxu0 %v860
        %971 = vmatprep.subr.bf16.mxu0 0
        %972 = vmatpush1.bf16.msra.mxu0 %v861
        %973 = vmatprep.subr.bf16.mxu0 0
        %974 = vmatpush1.bf16.msra.mxu0 %v862
        %975 = vmatprep.subr.bf16.mxu0 0
        %976 = vmatpush1.bf16.msra.mxu0 %v863
        %977 = vmatprep.subr.bf16.mxu0 0
        %978 = vmatpush1.bf16.msra.mxu0 %v864
        %979 = vmatprep.subr.bf16.mxu0 0
        %980 = vmatpush1.bf16.msra.mxu0 %v865
        %981 = vmatprep.subr.bf16.mxu0 0
        %982 = vmatpush1.bf16.msra.mxu0 %v866
        %983 = vmatprep.subr.bf16.mxu0 0
        %984 = vmatpush1.bf16.msra.mxu0 %v867
        %985 = vmatprep.subr.bf16.mxu0 0
        %986 = vmatpush1.bf16.msra.mxu0 %v868
        %987 = vmatprep.subr.bf16.mxu0 0
        %988 = vmatpush1.bf16.msra.mxu0 %v869
        %989 = vmatprep.subr.bf16.mxu0 0
        %990 = vmatpush1.bf16.msra.mxu0 %v870
        %991 = vmatprep.subr.bf16.mxu0 0
        %992 = vmatpush1.bf16.msra.mxu0 %v871
        %993 = vmatprep.mubr.bf16.mxu0 %v549
        %994 = vmatmul.mubr.bf16.gmra.mrb[0].mxu0 %v548
        %v995 = vpop.f32.mrb[0].mxu0
        %v996 = vadd.f32 0.0, %v995
        %v997 = vpop.f32.mrb[0].mxu0
        %v998 = vpop.f32.mrb[0].mxu0
        %v999 = vadd.f32 0.0, %v998
        %v1000 = vpop.f32.mrb[0].mxu0
        %1001 = vmatprep.mubr.bf16.mxu0 %v556
        %1002 = vmatmul.mubr.bf16.gmra.mrb[0].mxu0 %v555
        %v1003 = vpop.f32.mrb[0].mxu0
        %v1004 = vadd.f32 0.0, %v1003
        %v1005 = vpop.f32.mrb[0].mxu0
        %v1006 = vpop.f32.mrb[0].mxu0
        %v1007 = vpop.f32.mrb[0].mxu0
        %1008 = vdwg.mxu0
        %1009 = vmatprep.subr.bf16.mxu0 0
        %1010 = vmatpush1.bf16.msra.mxu0 %v872
        %1011 = vmatprep.subr.bf16.mxu0 0
        %1012 = vmatpush1.bf16.msra.mxu0 %v873
        %1013 = vmatprep.subr.bf16.mxu0 0
        %1014 = vmatpush1.bf16.msra.mxu0 %v874
        %1015 = vmatprep.subr.bf16.mxu0 0
        %1016 = vmatpush1.bf16.msra.mxu0 %v875
        %1017 = vmatprep.subr.bf16.mxu0 0
        %1018 = vmatpush1.bf16.msra.mxu0 %v876
        %1019 = vmatprep.subr.bf16.mxu0 0
        %1020 = vmatpush1.bf16.msra.mxu0 %v877
        %1021 = vmatprep.subr.bf16.mxu0 0
        %1022 = vmatpush1.bf16.msra.mxu0 %v878
        %1023 = vmatprep.subr.bf16.mxu0 0
        %1024 = vmatpush1.bf16.msra.mxu0 %v879
        %1025 = vmatprep.subr.bf16.mxu0 0
        %1026 = vmatpush1.bf16.msra.mxu0 %v880
        %1027 = vmatprep.subr.bf16.mxu0 0
        %1028 = vmatpush1.bf16.msra.mxu0 %v881
        %1029 = vmatprep.subr.bf16.mxu0 0
        %1030 = vmatpush1.bf16.msra.mxu0 %v882
        %1031 = vmatprep.subr.bf16.mxu0 0
        %1032 = vmatpush1.bf16.msra.mxu0 %v883
        %1033 = vmatprep.subr.bf16.mxu0 0
        %1034 = vmatpush1.bf16.msra.mxu0 %v884
        %1035 = vmatprep.subr.bf16.mxu0 0
        %1036 = vmatpush1.bf16.msra.mxu0 %v885
        %1037 = vmatprep.subr.bf16.mxu0 0
        %1038 = vmatpush1.bf16.msra.mxu0 %v886
        %1039 = vmatprep.subr.bf16.mxu0 0
        %1040 = vmatpush1.bf16.msra.mxu0 %v887
        %1041 = vmatprep.mubr.bf16.mxu0 %v551
        %1042 = vmatmul.mubr.bf16.gmra.mrb[0].mxu0 %v550
        %v1043 = vpop.f32.mrb[0].mxu0
        %v1044 = vadd.f32 %v996, %v1043
        %v1045 = vpop.f32.mrb[0].mxu0
        %v1046 = vpop.f32.mrb[0].mxu0
        %v1047 = vadd.f32 %v999, %v1046
        %v1048 = vpop.f32.mrb[0].mxu0
        %1049 = vmatprep.mubr.bf16.mxu0 %v558
        %1050 = vmatmul.mubr.bf16.gmra.mrb[0].mxu0 %v557
        %v1051 = vpop.f32.mrb[0].mxu0
        %v1052 = vadd.f32 %v1004, %v1051
        %v1053 = vpop.f32.mrb[0].mxu0
        %v1054 = vpop.f32.mrb[0].mxu0
        %v1055 = vpop.f32.mrb[0].mxu0
        %1056 = vdwg.mxu0
        %1057 = vmatprep.subr.bf16.mxu0 0
        %1058 = vmatpush1.bf16.msra.mxu0 %v888
        %1059 = vmatprep.subr.bf16.mxu0 0
        %1060 = vmatpush1.bf16.msra.mxu0 %v889
        %1061 = vmatprep.subr.bf16.mxu0 0
        %1062 = vmatpush1.bf16.msra.mxu0 %v890
        %1063 = vmatprep.subr.bf16.mxu0 0
        %1064 = vmatpush1.bf16.msra.mxu0 %v891
        %1065 = vmatprep.subr.bf16.mxu0 0
        %1066 = vmatpush1.bf16.msra.mxu0 %v892
        %1067 = vmatprep.subr.bf16.mxu0 0
        %1068 = vmatpush1.bf16.msra.mxu0 %v893
        %1069 = vmatprep.subr.bf16.mxu0 0
        %1070 = vmatpush1.bf16.msra.mxu0 %v894
        %1071 = vmatprep.subr.bf16.mxu0 0
        %1072 = vmatpush1.bf16.msra.mxu0 %v895
        %1073 = vmatprep.subr.bf16.mxu0 0
        %1074 = vmatpush1.bf16.msra.mxu0 %v896
        %1075 = vmatprep.subr.bf16.mxu0 0
        %1076 = vmatpush1.bf16.msra.mxu0 %v897
        %1077 = vmatprep.subr.bf16.mxu0 0
        %1078 = vmatpush1.bf16.msra.mxu0 %v898
        %1079 = vmatprep.subr.bf16.mxu0 0
        %1080 = vmatpush1.bf16.msra.mxu0 %v899
        %1081 = vmatprep.subr.bf16.mxu0 0
        %1082 = vmatpush1.bf16.msra.mxu0 %v900
        %1083 = vmatprep.subr.bf16.mxu0 0
        %1084 = vmatpush1.bf16.msra.mxu0 %v901
        %1085 = vmatprep.subr.bf16.mxu0 0
        %1086 = vmatpush1.bf16.msra.mxu0 %v902
        %1087 = vmatprep.subr.bf16.mxu0 0
        %1088 = vmatpush1.bf16.msra.mxu0 %v903
        %1089 = vmatprep.mubr.bf16.mxu0 %v553
        %1090 = vmatmul.mubr.bf16.gmra.mrb[0].mxu0 %v552
        %v1091 = vpop.f32.mrb[0].mxu0
        %v1092 = vadd.f32 %v1044, %v1091
        %v1093 = vpop.f32.mrb[0].mxu0
        %v1094 = vpop.f32.mrb[0].mxu0
        %v1095 = vadd.f32 %v1047, %v1094
        %v1096 = vpop.f32.mrb[0].mxu0
        %1097 = vmatprep.mubr.bf16.mxu0 %v560
        %1098 = vmatmul.mubr.bf16.gmra.mrb[0].mxu0 %v559
        %v1099 = vpop.f32.mrb[0].mxu0
        %v1100 = vadd.f32 %v1052, %v1099
        %v1101 = vpop.f32.mrb[0].mxu0
        %v1102 = vpop.f32.mrb[0].mxu0
        %v1103 = vpop.f32.mrb[0].mxu0
        %1104 = vdwg.mxu0
        %1105 = vmatprep.subr.bf16.mxu0 0
        %1106 = vmatpush1.bf16.msra.mxu0 %v904
        %1107 = vmatprep.subr.bf16.mxu0 0
        %1108 = vmatpush1.bf16.msra.mxu0 0
        %1109 = vmatprep.subr.bf16.mxu0 0
        %1110 = vmatpush1.bf16.msra.mxu0 0
        %1111 = vmatprep.subr.bf16.mxu0 0
        %1112 = vmatpush1.bf16.msra.mxu0 0
        %1113 = vmatprep.subr.bf16.mxu0 0
        %1114 = vmatpush1.bf16.msra.mxu0 0
        %1115 = vmatprep.subr.bf16.mxu0 0
        %1116 = vmatpush1.bf16.msra.mxu0 0
        %1117 = vmatprep.subr.bf16.mxu0 0
        %1118 = vmatpush1.bf16.msra.mxu0 0
        %1119 = vmatprep.subr.bf16.mxu0 0
        %1120 = vmatpush1.bf16.msra.mxu0 0
        %1121 = vmatprep.subr.bf16.mxu0 0
        %1122 = vmatpush1.bf16.msra.mxu0 0
        %1123 = vmatprep.subr.bf16.mxu0 0
        %1124 = vmatpush1.bf16.msra.mxu0 0
        %1125 = vmatprep.subr.bf16.mxu0 0
        %1126 = vmatpush1.bf16.msra.mxu0 0
        %1127 = vmatprep.subr.bf16.mxu0 0
        %1128 = vmatpush1.bf16.msra.mxu0 0
        %1129 = vmatprep.subr.bf16.mxu0 0
        %1130 = vmatpush1.bf16.msra.mxu0 0
        %1131 = vmatprep.subr.bf16.mxu0 0
        %1132 = vmatpush1.bf16.msra.mxu0 0
        %1133 = vmatprep.subr.bf16.mxu0 0
        %1134 = vmatpush1.bf16.msra.mxu0 0
        %1135 = vmatprep.subr.bf16.mxu0 0
        %1136 = vmatpush1.bf16.msra.mxu0 0
        %1137 = vmatprep.mubr.bf16.mxu0 0
        %1138 = vmatmul.mubr.bf16.gmra.mrb[0].mxu0 %v956
        %v1139 = vpop.f32.mrb[0].mxu0
        %v1140 = vadd.f32 %v1092, %v1139
        %v1141 = vpop.f32.mrb[0].mxu0
        %v1142 = vpop.f32.mrb[0].mxu0
        %v1143 = vadd.f32 %v1095, %v1142
        %v1144 = vpop.f32.mrb[0].mxu0
        %1145 = vmatprep.mubr.bf16.mxu0 0
        %1146 = vmatmul.mubr.bf16.gmra.mrb[0].mxu0 %v959
        %v1147 = vpop.f32.mrb[0].mxu0
        %v1148 = vadd.f32 %v1100, %v1147
        %v1149 = vpop.f32.mrb[0].mxu0
        %v1150 = vpop.f32.mrb[0].mxu0
        %v1151 = vpop.f32.mrb[0].mxu0
        %1152 = vdwg.mxu0
        %v1154 = vsel %vm954, %v498, 0
        %v1157 = vsel %vm954, %v505, 0
        %1159 = vmatprep.subr.bf16.mxu0 0
        %1160 = vmatpush1.bf16.msra.mxu0 %v856
        %1161 = vmatprep.subr.bf16.mxu0 0
        %1162 = vmatpush1.bf16.msra.mxu0 %v857
        %1163 = vmatprep.subr.bf16.mxu0 0
        %1164 = vmatpush1.bf16.msra.mxu0 %v858
        %1165 = vmatprep.subr.bf16.mxu0 0
        %1166 = vmatpush1.bf16.msra.mxu0 %v859
        %1167 = vmatprep.subr.bf16.mxu0 0
        %1168 = vmatpush1.bf16.msra.mxu0 %v860
        %1169 = vmatprep.subr.bf16.mxu0 0
        %1170 = vmatpush1.bf16.msra.mxu0 %v861
        %1171 = vmatprep.subr.bf16.mxu0 0
        %1172 = vmatpush1.bf16.msra.mxu0 %v862
        %1173 = vmatprep.subr.bf16.mxu0 0
        %1174 = vmatpush1.bf16.msra.mxu0 %v863
        %1175 = vmatprep.subr.bf16.mxu0 0
        %1176 = vmatpush1.bf16.msra.mxu0 %v864
        %1177 = vmatprep.subr.bf16.mxu0 0
        %1178 = vmatpush1.bf16.msra.mxu0 %v865
        %1179 = vmatprep.subr.bf16.mxu0 0
        %1180 = vmatpush1.bf16.msra.mxu0 %v866
        %1181 = vmatprep.subr.bf16.mxu0 0
        %1182 = vmatpush1.bf16.msra.mxu0 %v867
        %1183 = vmatprep.subr.bf16.mxu0 0
        %1184 = vmatpush1.bf16.msra.mxu0 %v868
        %1185 = vmatprep.subr.bf16.mxu0 0
        %1186 = vmatpush1.bf16.msra.mxu0 %v869
        %1187 = vmatprep.subr.bf16.mxu0 0
        %1188 = vmatpush1.bf16.msra.mxu0 %v870
        %1189 = vmatprep.subr.bf16.mxu0 0
        %1190 = vmatpush1.bf16.msra.mxu0 %v871
        %1191 = vmatprep.mubr.bf16.mxu0 %v493
        %1192 = vmatmul.mubr.bf16.gmra.mrb[0].mxu0 %v492
        %v1193 = vpop.f32.mrb[0].mxu0
        %v1194 = vadd.f32 %v1140, %v1193
        %v1195 = vpop.f32.mrb[0].mxu0
        %v1196 = vpop.f32.mrb[0].mxu0
        %v1197 = vadd.f32 %v1143, %v1196
        %v1198 = vpop.f32.mrb[0].mxu0
        %1199 = vmatprep.mubr.bf16.mxu0 %v500
        %1200 = vmatmul.mubr.bf16.gmra.mrb[0].mxu0 %v499
        %v1201 = vpop.f32.mrb[0].mxu0
        %v1202 = vadd.f32 %v1148, %v1201
        %v1203 = vpop.f32.mrb[0].mxu0
        %v1204 = vpop.f32.mrb[0].mxu0
        %v1205 = vpop.f32.mrb[0].mxu0
        %1206 = vdwg.mxu0
        %1207 = vmatprep.subr.bf16.mxu0 0
        %1208 = vmatpush1.bf16.msra.mxu0 %v872
        %1209 = vmatprep.subr.bf16.mxu0 0
        %1210 = vmatpush1.bf16.msra.mxu0 %v873
        %1211 = vmatprep.subr.bf16.mxu0 0
        %1212 = vmatpush1.bf16.msra.mxu0 %v874
        %1213 = vmatprep.subr.bf16.mxu0 0
        %1214 = vmatpush1.bf16.msra.mxu0 %v875
        %1215 = vmatprep.subr.bf16.mxu0 0
        %1216 = vmatpush1.bf16.msra.mxu0 %v876
        %1217 = vmatprep.subr.bf16.mxu0 0
        %1218 = vmatpush1.bf16.msra.mxu0 %v877
        %1219 = vmatprep.subr.bf16.mxu0 0
        %1220 = vmatpush1.bf16.msra.mxu0 %v878
        %1221 = vmatprep.subr.bf16.mxu0 0
        %1222 = vmatpush1.bf16.msra.mxu0 %v879
        %1223 = vmatprep.subr.bf16.mxu0 0
        %1224 = vmatpush1.bf16.msra.mxu0 %v880
        %1225 = vmatprep.subr.bf16.mxu0 0
        %1226 = vmatpush1.bf16.msra.mxu0 %v881
        %1227 = vmatprep.subr.bf16.mxu0 0
        %1228 = vmatpush1.bf16.msra.mxu0 %v882
        %1229 = vmatprep.subr.bf16.mxu0 0
        %1230 = vmatpush1.bf16.msra.mxu0 %v883
        %1231 = vmatprep.subr.bf16.mxu0 0
        %1232 = vmatpush1.bf16.msra.mxu0 %v884
        %1233 = vmatprep.subr.bf16.mxu0 0
        %1234 = vmatpush1.bf16.msra.mxu0 %v885
        %1235 = vmatprep.subr.bf16.mxu0 0
        %1236 = vmatpush1.bf16.msra.mxu0 %v886
        %1237 = vmatprep.subr.bf16.mxu0 0
        %1238 = vmatpush1.bf16.msra.mxu0 %v887
        %1239 = vmatprep.mubr.bf16.mxu0 %v495
        %1240 = vmatmul.mubr.bf16.gmra.mrb[0].mxu0 %v494
        %v1241 = vpop.f32.mrb[0].mxu0
        %v1242 = vadd.f32 %v1194, %v1241
        %v1243 = vpop.f32.mrb[0].mxu0
        %v1244 = vpop.f32.mrb[0].mxu0
        %v1245 = vadd.f32 %v1197, %v1244
        %v1246 = vpop.f32.mrb[0].mxu0
        %1247 = vmatprep.mubr.bf16.mxu0 %v502
        %1248 = vmatmul.mubr.bf16.gmra.mrb[0].mxu0 %v501
        %v1249 = vpop.f32.mrb[0].mxu0
        %v1250 = vadd.f32 %v1202, %v1249
        %v1251 = vpop.f32.mrb[0].mxu0
        %v1252 = vpop.f32.mrb[0].mxu0
        %v1253 = vpop.f32.mrb[0].mxu0
        %1254 = vdwg.mxu0
        %1255 = vmatprep.subr.bf16.mxu0 0
        %1256 = vmatpush1.bf16.msra.mxu0 %v888
        %1257 = vmatprep.subr.bf16.mxu0 0
        %1258 = vmatpush1.bf16.msra.mxu0 %v889
        %1259 = vmatprep.subr.bf16.mxu0 0
        %1260 = vmatpush1.bf16.msra.mxu0 %v890
        %1261 = vmatprep.subr.bf16.mxu0 0
        %1262 = vmatpush1.bf16.msra.mxu0 %v891
        %1263 = vmatprep.subr.bf16.mxu0 0
        %1264 = vmatpush1.bf16.msra.mxu0 %v892
        %1265 = vmatprep.subr.bf16.mxu0 0
        %1266 = vmatpush1.bf16.msra.mxu0 %v893
        %1267 = vmatprep.subr.bf16.mxu0 0
        %1268 = vmatpush1.bf16.msra.mxu0 %v894
        %1269 = vmatprep.subr.bf16.mxu0 0
        %1270 = vmatpush1.bf16.msra.mxu0 %v895
        %1271 = vmatprep.subr.bf16.mxu0 0
        %1272 = vmatpush1.bf16.msra.mxu0 %v896
        %1273 = vmatprep.subr.bf16.mxu0 0
        %1274 = vmatpush1.bf16.msra.mxu0 %v897
        %1275 = vmatprep.subr.bf16.mxu0 0
        %1276 = vmatpush1.bf16.msra.mxu0 %v898
        %1277 = vmatprep.subr.bf16.mxu0 0
        %1278 = vmatpush1.bf16.msra.mxu0 %v899
        %1279 = vmatprep.subr.bf16.mxu0 0
        %1280 = vmatpush1.bf16.msra.mxu0 %v900
        %1281 = vmatprep.subr.bf16.mxu0 0
        %1282 = vmatpush1.bf16.msra.mxu0 %v901
        %1283 = vmatprep.subr.bf16.mxu0 0
        %1284 = vmatpush1.bf16.msra.mxu0 %v902
        %1285 = vmatprep.subr.bf16.mxu0 0
        %1286 = vmatpush1.bf16.msra.mxu0 %v903
        %1287 = vmatprep.mubr.bf16.mxu0 %v497
        %1288 = vmatmul.mubr.bf16.gmra.mrb[0].mxu0 %v496
        %v1289 = vpop.f32.mrb[0].mxu0
        %v1290 = vadd.f32 %v1242, %v1289
        %v1291 = vpop.f32.mrb[0].mxu0
        %v1292 = vpop.f32.mrb[0].mxu0
        %v1293 = vadd.f32 %v1245, %v1292
        %v1294 = vpop.f32.mrb[0].mxu0
        %1295 = vmatprep.mubr.bf16.mxu0 %v504
        %1296 = vmatmul.mubr.bf16.gmra.mrb[0].mxu0 %v503
        %v1297 = vpop.f32.mrb[0].mxu0
        %v1298 = vadd.f32 %v1250, %v1297
        %v1299 = vpop.f32.mrb[0].mxu0
        %v1300 = vpop.f32.mrb[0].mxu0
        %v1301 = vpop.f32.mrb[0].mxu0
        %1302 = vdwg.mxu0
        %1303 = vmatprep.subr.bf16.mxu0 0
        %1304 = vmatpush1.bf16.msra.mxu0 %v904
        %1305 = vmatprep.subr.bf16.mxu0 0
        %1306 = vmatpush1.bf16.msra.mxu0 0
        %1307 = vmatprep.subr.bf16.mxu0 0
        %1308 = vmatpush1.bf16.msra.mxu0 0
        %1309 = vmatprep.subr.bf16.mxu0 0
        %1310 = vmatpush1.bf16.msra.mxu0 0
        %1311 = vmatprep.subr.bf16.mxu0 0
        %1312 = vmatpush1.bf16.msra.mxu0 0
        %1313 = vmatprep.subr.bf16.mxu0 0
        %1314 = vmatpush1.bf16.msra.mxu0 0
        %1315 = vmatprep.subr.bf16.mxu0 0
        %1316 = vmatpush1.bf16.msra.mxu0 0
        %1317 = vmatprep.subr.bf16.mxu0 0
        %1318 = vmatpush1.bf16.msra.mxu0 0
        %1319 = vmatprep.subr.bf16.mxu0 0
        %1320 = vmatpush1.bf16.msra.mxu0 0
        %1321 = vmatprep.subr.bf16.mxu0 0
        %1322 = vmatpush1.bf16.msra.mxu0 0
        %1323 = vmatprep.subr.bf16.mxu0 0
        %1324 = vmatpush1.bf16.msra.mxu0 0
        %1325 = vmatprep.subr.bf16.mxu0 0
        %1326 = vmatpush1.bf16.msra.mxu0 0
        %1327 = vmatprep.subr.bf16.mxu0 0
        %1328 = vmatpush1.bf16.msra.mxu0 0
        %1329 = vmatprep.subr.bf16.mxu0 0
        %1330 = vmatpush1.bf16.msra.mxu0 0
        %1331 = vmatprep.subr.bf16.mxu0 0
        %1332 = vmatpush1.bf16.msra.mxu0 0
        %1333 = vmatprep.subr.bf16.mxu0 0
        %1334 = vmatpush1.bf16.msra.mxu0 0
        %1335 = vmatprep.mubr.bf16.mxu0 0
        %1336 = vmatmul.mubr.bf16.gmra.mrb[0].mxu0 %v1154
        %v1337 = vpop.f32.mrb[0].mxu0
        %v1338 = vadd.f32 %v1290, %v1337
        %v1339 = vpop.f32.mrb[0].mxu0
        %v1340 = vpop.f32.mrb[0].mxu0
        %v1341 = vadd.f32 %v1293, %v1340
        %v1342 = vpop.f32.mrb[0].mxu0
        %1343 = vmatprep.mubr.bf16.mxu0 0
        %1344 = vmatmul.mubr.bf16.gmra.mrb[0].mxu0 %v1157
        %v1345 = vpop.f32.mrb[0].mxu0
        %v1346 = vadd.f32 %v1298, %v1345
        %v1347 = vpop.f32.mrb[0].mxu0
        %v1348 = vpop.f32.mrb[0].mxu0
        %v1349 = vpop.f32.mrb[0].mxu0
        %1350 = vdwg.mxu0
        %v1351 = vld [vmem:[%s2] sm:$0xf]
        %v1352 = vld [vmem:[%s2 + $0x4] sm:$0xf]
        %v1353 = vld [vmem:[%s2 + $0x8] sm:$0xf]
        %v1354 = vld [vmem:[%s2 + $0xc] sm:$0xf]
        %v1355 = vld [vmem:[%s2 + $0x10] sm:$0xf]
        %v1356 = vld [vmem:[%s2 + $0x14] sm:$0xf]
        %v1357 = vld [vmem:[%s2 + $0x18] sm:$0xf]
        %v1358 = vld [vmem:[%s2 + $0x1c] sm:$0xf]
        %v1359 = vld [vmem:[%s2 + $0x20] sm:$0xf]
        %v1360 = vld [vmem:[%s2 + $0x24] sm:$0xf]
        %v1361 = vld [vmem:[%s2 + $0x28] sm:$0xf]
        %v1362 = vld [vmem:[%s2 + $0x2c] sm:$0xf]
        %v1363 = vld [vmem:[%s2 + $0x30] sm:$0xf]
        %v1364 = vld [vmem:[%s2 + $0x34] sm:$0xf]
        %v1365 = vld [vmem:[%s2 + $0x38] sm:$0xf]
        %v1366 = vld [vmem:[%s2 + $0x3c] sm:$0xf]
        %v1367 = vld [vmem:[%s2 + $0x40] sm:$0xf]
        %v1368 = vld [vmem:[%s2 + $0x44] sm:$0xf]
        %v1369 = vld [vmem:[%s2 + $0x48] sm:$0xf]
        %v1370 = vld [vmem:[%s2 + $0x4c] sm:$0xf]
        %v1371 = vld [vmem:[%s2 + $0x50] sm:$0xf]
        %v1372 = vld [vmem:[%s2 + $0x54] sm:$0xf]
        %v1373 = vld [vmem:[%s2 + $0x58] sm:$0xf]
        %v1374 = vld [vmem:[%s2 + $0x5c] sm:$0xf]
        %v1375 = vld [vmem:[%s2 + $0x60] sm:$0xf]
        %v1376 = vld [vmem:[%s2 + $0x64] sm:$0xf]
        %v1377 = vld [vmem:[%s2 + $0x68] sm:$0xf]
        %v1378 = vld [vmem:[%s2 + $0x6c] sm:$0xf]
        %v1379 = vld [vmem:[%s2 + $0x70] sm:$0xf]
        %v1380 = vld [vmem:[%s2 + $0x74] sm:$0xf]
        %v1381 = vld [vmem:[%s2 + $0x78] sm:$0xf]
        %v1382 = vld [vmem:[%s2 + $0x7c] sm:$0xf]
        %v1383 = vld [vmem:[%s2 + $0x80] sm:$0xf]
        %v1384 = vld [vmem:[%s2 + $0x84] sm:$0xf]
        %v1385 = vld [vmem:[%s2 + $0x88] sm:$0xf]
        %v1386 = vld [vmem:[%s2 + $0x8c] sm:$0xf]
        %v1387 = vld [vmem:[%s2 + $0x90] sm:$0xf]
        %v1388 = vld [vmem:[%s2 + $0x94] sm:$0xf]
        %v1389 = vld [vmem:[%s2 + $0x98] sm:$0xf]
        %v1390 = vld [vmem:[%s2 + $0x9c] sm:$0xf]
        %v1391 = vld [vmem:[%s2 + $0xa0] sm:$0xf]
        %v1392 = vld [vmem:[%s2 + $0xa4] sm:$0xf]
        %v1393 = vld [vmem:[%s2 + $0xa8] sm:$0xf]
        %v1394 = vld [vmem:[%s2 + $0xac] sm:$0xf]
        %v1395 = vld [vmem:[%s2 + $0xb0] sm:$0xf]
        %v1396 = vld [vmem:[%s2 + $0xb4] sm:$0xf]
        %v1397 = vld [vmem:[%s2 + $0xb8] sm:$0xf]
        %v1398 = vld [vmem:[%s2 + $0xbc] sm:$0xf]
        %v1399 = vld [vmem:[%s2 + $0xc0] sm:$0xf]
        %v1400 = vld [vmem:[%s2 + $0xc4] sm:$0xf]
        %v1401 = vld [vmem:[%s2 + $0xc8] sm:$0xf]
        %v1402 = vld [vmem:[%s2 + $0xcc] sm:$0xf]
        %v1403 = vld [vmem:[%s2 + $0xd0] sm:$0xf]
        %v1404 = vld [vmem:[%s2 + $0xd4] sm:$0xf]
        %v1405 = vld [vmem:[%s2 + $0xd8] sm:$0xf]
        %v1406 = vld [vmem:[%s2 + $0xdc] sm:$0xf]
        %v1407 = vld [vmem:[%s2 + $0xe0] sm:$0xf]
        %v1408 = vld [vmem:[%s2 + $0xe4] sm:$0xf]
        %v1409 = vld [vmem:[%s2 + $0xe8] sm:$0xf]
        %v1410 = vld [vmem:[%s2 + $0xec] sm:$0xf]
        %v1411 = vld [vmem:[%s2 + $0xf0] sm:$0xf]
        %v1412 = vld [vmem:[%s2 + $0xf4] sm:$0xf]
        %v1413 = vld [vmem:[%s2 + $0xf8] sm:$0xf]
        %v1414 = vld [vmem:[%s2 + $0xfc] sm:$0xf]
        %v1415 = vld [vmem:[%s2 + $0x100] sm:$0xf]
        %v1416 = vld [vmem:[%s2 + $0x104] sm:$0xf]
        %v1417 = vld [vmem:[%s2 + $0x108] sm:$0xf]
        %v1418 = vld [vmem:[%s2 + $0x10c] sm:$0xf]
        %v1419 = vld [vmem:[%s2 + $0x110] sm:$0xf]
        %v1420 = vld [vmem:[%s2 + $0x114] sm:$0xf]
        %v1421 = vld [vmem:[%s2 + $0x118] sm:$0xf]
        %v1422 = vld [vmem:[%s2 + $0x11c] sm:$0xf]
        %v1423 = vld [vmem:[%s2 + $0x120] sm:$0xf]
        %v1424 = vld [vmem:[%s2 + $0x124] sm:$0xf]
        %v1425 = vld [vmem:[%s2 + $0x128] sm:$0xf]
        %v1426 = vld [vmem:[%s2 + $0x12c] sm:$0xf]
        %v1427 = vld [vmem:[%s2 + $0x130] sm:$0xf]
        %v1428 = vld [vmem:[%s2 + $0x134] sm:$0xf]
        %v1429 = vld [vmem:[%s2 + $0x138] sm:$0xf]
        %v1430 = vld [vmem:[%s2 + $0x13c] sm:$0xf]
        %v1431 = vld [vmem:[%s2 + $0x140] sm:$0xf]
        %v1432 = vld [vmem:[%s2 + $0x144] sm:$0xf]
        %v1433 = vld [vmem:[%s2 + $0x148] sm:$0xf]
        %v1434 = vld [vmem:[%s2 + $0x14c] sm:$0xf]
        %v1435 = vld [vmem:[%s2 + $0x150] sm:$0xf]
        %v1436 = vld [vmem:[%s2 + $0x154] sm:$0xf]
        %v1437 = vld [vmem:[%s2 + $0x158] sm:$0xf]
        %v1438 = vld [vmem:[%s2 + $0x15c] sm:$0xf]
        %v1439 = vld [vmem:[%s2 + $0x160] sm:$0xf]
        %v1440 = vld [vmem:[%s2 + $0x164] sm:$0xf]
        %v1441 = vld [vmem:[%s2 + $0x168] sm:$0xf]
        %v1442 = vld [vmem:[%s2 + $0x16c] sm:$0xf]
        %v1443 = vld [vmem:[%s2 + $0x170] sm:$0xf]
        %v1444 = vld [vmem:[%s2 + $0x174] sm:$0xf]
        %v1445 = vld [vmem:[%s2 + $0x178] sm:$0xf]
        %v1446 = vld [vmem:[%s2 + $0x17c] sm:$0xf]
        %v1447 = vld [vmem:[%s2 + $0x180] sm:$0xf]
        %v1448 = vld [vmem:[%s2 + $0x184] sm:$0xf]
        %v1547 = vunpack.c.l.b16 %v1351
        %v1548 = vunpack.c.l.b16 %v1352
        %v1549 = vunpack.c.l.b16 %v1353
        %v1550 = vunpack.c.l.b16 %v1354
        %v1551 = vunpack.c.l.b16 %v1355
        %v1552 = vunpack.c.l.b16 %v1356
        %v1553 = vunpack.c.l.b16 %v1357
        %v1554 = vunpack.c.l.b16 %v1358
        %v1555 = vunpack.c.l.b16 %v1359
        %v1556 = vunpack.c.l.b16 %v1360
        %v1557 = vunpack.c.l.b16 %v1361
        %v1558 = vunpack.c.l.b16 %v1362
        %v1559 = vunpack.c.l.b16 %v1363
        %v1560 = vunpack.c.l.b16 %v1364
        %v1561 = vunpack.c.l.b16 %v1365
        %v1562 = vunpack.c.l.b16 %v1366
        %v1563 = vunpack.c.l.b16 %v1367
        %v1564 = vunpack.c.l.b16 %v1368
        %v1565 = vunpack.c.l.b16 %v1369
        %v1566 = vunpack.c.l.b16 %v1370
        %v1567 = vunpack.c.l.b16 %v1371
        %v1568 = vunpack.c.l.b16 %v1372
        %v1569 = vunpack.c.l.b16 %v1373
        %v1570 = vunpack.c.l.b16 %v1374
        %v1571 = vunpack.c.l.b16 %v1375
        %v1572 = vunpack.c.l.b16 %v1376
        %v1573 = vunpack.c.l.b16 %v1377
        %v1574 = vunpack.c.l.b16 %v1378
        %v1575 = vunpack.c.l.b16 %v1379
        %v1576 = vunpack.c.l.b16 %v1380
        %v1577 = vunpack.c.l.b16 %v1381
        %v1578 = vunpack.c.l.b16 %v1382
        %v1579 = vunpack.c.l.b16 %v1383
        %v1580 = vunpack.c.l.b16 %v1384
        %v1581 = vunpack.c.l.b16 %v1385
        %v1582 = vunpack.c.l.b16 %v1386
        %v1583 = vunpack.c.l.b16 %v1387
        %v1584 = vunpack.c.l.b16 %v1388
        %v1585 = vunpack.c.l.b16 %v1389
        %v1586 = vunpack.c.l.b16 %v1390
        %v1587 = vunpack.c.l.b16 %v1391
        %v1588 = vunpack.c.l.b16 %v1392
        %v1589 = vunpack.c.l.b16 %v1393
        %v1590 = vunpack.c.l.b16 %v1394
        %v1591 = vunpack.c.l.b16 %v1395
        %v1592 = vunpack.c.l.b16 %v1396
        %v1593 = vunpack.c.l.b16 %v1397
        %v1594 = vunpack.c.l.b16 %v1398
        %v1595 = vunpack.c.l.b16 %v1399
        %v1596 = vunpack.c.l.b16 %v1400
        %v1597 = vunpack.c.l.b16 %v1401
        %v1598 = vunpack.c.l.b16 %v1402
        %v1599 = vunpack.c.l.b16 %v1403
        %v1600 = vunpack.c.l.b16 %v1404
        %v1601 = vunpack.c.l.b16 %v1405
        %v1602 = vunpack.c.l.b16 %v1406
        %v1603 = vunpack.c.l.b16 %v1407
        %v1604 = vunpack.c.l.b16 %v1408
        %v1605 = vunpack.c.l.b16 %v1409
        %v1606 = vunpack.c.l.b16 %v1410
        %v1607 = vunpack.c.l.b16 %v1411
        %v1608 = vunpack.c.l.b16 %v1412
        %v1609 = vunpack.c.l.b16 %v1413
        %v1610 = vunpack.c.l.b16 %v1414
        %v1611 = vunpack.c.l.b16 %v1415
        %v1612 = vunpack.c.l.b16 %v1416
        %v1613 = vunpack.c.l.b16 %v1417
        %v1614 = vunpack.c.l.b16 %v1418
        %v1615 = vunpack.c.l.b16 %v1419
        %v1616 = vunpack.c.l.b16 %v1420
        %v1617 = vunpack.c.l.b16 %v1421
        %v1618 = vunpack.c.l.b16 %v1422
        %v1619 = vunpack.c.l.b16 %v1423
        %v1620 = vunpack.c.l.b16 %v1424
        %v1621 = vunpack.c.l.b16 %v1425
        %v1622 = vunpack.c.l.b16 %v1426
        %v1623 = vunpack.c.l.b16 %v1427
        %v1624 = vunpack.c.l.b16 %v1428
        %v1625 = vunpack.c.l.b16 %v1429
        %v1626 = vunpack.c.l.b16 %v1430
        %v1627 = vunpack.c.l.b16 %v1431
        %v1628 = vunpack.c.l.b16 %v1432
        %v1629 = vunpack.c.l.b16 %v1433
        %v1630 = vunpack.c.l.b16 %v1434
        %v1631 = vunpack.c.l.b16 %v1435
        %v1632 = vunpack.c.l.b16 %v1436
        %v1633 = vunpack.c.l.b16 %v1437
        %v1634 = vunpack.c.l.b16 %v1438
        %v1635 = vunpack.c.l.b16 %v1439
        %v1636 = vunpack.c.l.b16 %v1440
        %v1637 = vunpack.c.l.b16 %v1441
        %v1638 = vunpack.c.l.b16 %v1442
        %v1639 = vunpack.c.l.b16 %v1443
        %v1640 = vunpack.c.l.b16 %v1444
        %v1641 = vunpack.c.l.b16 %v1445
        %v1642 = vunpack.c.l.b16 %v1446
        %v1643 = vunpack.c.l.b16 %v1447
        %v1644 = vunpack.c.l.b16 %v1448
        %v1645 = vpack.c.b16 %v1548, %v1547
        %v1646 = vpack.c.b16 %v1550, %v1549
        %v1647 = vpack.c.b16 %v1552, %v1551
        %v1648 = vpack.c.b16 %v1554, %v1553
        %v1649 = vpack.c.b16 %v1556, %v1555
        %v1650 = vpack.c.b16 %v1558, %v1557
        %v1651 = vpack.c.b16 %v1560, %v1559
        %v1652 = vpack.c.b16 %v1562, %v1561
        %v1653 = vpack.c.b16 %v1564, %v1563
        %v1654 = vpack.c.b16 %v1566, %v1565
        %v1655 = vpack.c.b16 %v1568, %v1567
        %v1656 = vpack.c.b16 %v1570, %v1569
        %v1657 = vpack.c.b16 %v1572, %v1571
        %v1658 = vpack.c.b16 %v1574, %v1573
        %v1659 = vpack.c.b16 %v1576, %v1575
        %v1660 = vpack.c.b16 %v1578, %v1577
        %v1661 = vpack.c.b16 %v1580, %v1579
        %v1662 = vpack.c.b16 %v1582, %v1581
        %v1663 = vpack.c.b16 %v1584, %v1583
        %v1664 = vpack.c.b16 %v1586, %v1585
        %v1665 = vpack.c.b16 %v1588, %v1587
        %v1666 = vpack.c.b16 %v1590, %v1589
        %v1667 = vpack.c.b16 %v1592, %v1591
        %v1668 = vpack.c.b16 %v1594, %v1593
        %v1669 = vpack.c.b16 %v1596, %v1595
        %v1670 = vpack.c.b16 %v1598, %v1597
        %v1671 = vpack.c.b16 %v1600, %v1599
        %v1672 = vpack.c.b16 %v1602, %v1601
        %v1673 = vpack.c.b16 %v1604, %v1603
        %v1674 = vpack.c.b16 %v1606, %v1605
        %v1675 = vpack.c.b16 %v1608, %v1607
        %v1676 = vpack.c.b16 %v1610, %v1609
        %v1677 = vpack.c.b16 %v1612, %v1611
        %v1678 = vpack.c.b16 %v1614, %v1613
        %v1679 = vpack.c.b16 %v1616, %v1615
        %v1680 = vpack.c.b16 %v1618, %v1617
        %v1681 = vpack.c.b16 %v1620, %v1619
        %v1682 = vpack.c.b16 %v1622, %v1621
        %v1683 = vpack.c.b16 %v1624, %v1623
        %v1684 = vpack.c.b16 %v1626, %v1625
        %v1685 = vpack.c.b16 %v1628, %v1627
        %v1686 = vpack.c.b16 %v1630, %v1629
        %v1687 = vpack.c.b16 %v1632, %v1631
        %v1688 = vpack.c.b16 %v1634, %v1633
        %v1689 = vpack.c.b16 %v1636, %v1635
        %v1690 = vpack.c.b16 %v1638, %v1637
        %v1691 = vpack.c.b16 %v1640, %v1639
        %v1692 = vpack.c.b16 %v1642, %v1641
        %v1693 = vpack.c.b16 %v1644, %v1643
        %1743 = vmatprep.subr.bf16.mxu0 0
        %1744 = vmatpush1.bf16.msra.mxu0 %v1645
        %1745 = vmatprep.subr.bf16.mxu0 0
        %1746 = vmatpush1.bf16.msra.mxu0 %v1646
        %1747 = vmatprep.subr.bf16.mxu0 0
        %1748 = vmatpush1.bf16.msra.mxu0 %v1647
        %1749 = vmatprep.subr.bf16.mxu0 0
        %1750 = vmatpush1.bf16.msra.mxu0 %v1648
        %1751 = vmatprep.subr.bf16.mxu0 0
        %1752 = vmatpush1.bf16.msra.mxu0 %v1649
        %1753 = vmatprep.subr.bf16.mxu0 0
        %1754 = vmatpush1.bf16.msra.mxu0 %v1650
        %1755 = vmatprep.subr.bf16.mxu0 0
        %1756 = vmatpush1.bf16.msra.mxu0 %v1651
        %1757 = vmatprep.subr.bf16.mxu0 0
        %1758 = vmatpush1.bf16.msra.mxu0 %v1652
        %1759 = vmatprep.subr.bf16.mxu0 0
        %1760 = vmatpush1.bf16.msra.mxu0 %v1653
        %1761 = vmatprep.subr.bf16.mxu0 0
        %1762 = vmatpush1.bf16.msra.mxu0 %v1654
        %1763 = vmatprep.subr.bf16.mxu0 0
        %1764 = vmatpush1.bf16.msra.mxu0 %v1655
        %1765 = vmatprep.subr.bf16.mxu0 0
        %1766 = vmatpush1.bf16.msra.mxu0 %v1656
        %1767 = vmatprep.subr.bf16.mxu0 0
        %1768 = vmatpush1.bf16.msra.mxu0 %v1657
        %1769 = vmatprep.subr.bf16.mxu0 0
        %1770 = vmatpush1.bf16.msra.mxu0 %v1658
        %1771 = vmatprep.subr.bf16.mxu0 0
        %1772 = vmatpush1.bf16.msra.mxu0 %v1659
        %1773 = vmatprep.subr.bf16.mxu0 0
        %1774 = vmatpush1.bf16.msra.mxu0 %v1660
        %1775 = vmatprep.mubr.bf16.mxu0 %v493
        %1776 = vmatmul.mubr.bf16.gmra.mrb[0].mxu0 %v492
        %v1777 = vpop.f32.mrb[0].mxu0
        %v1778 = vadd.f32 0.0, %v1777
        %v1779 = vpop.f32.mrb[0].mxu0
        %v1780 = vpop.f32.mrb[0].mxu0
        %v1781 = vadd.f32 0.0, %v1780
        %v1782 = vpop.f32.mrb[0].mxu0
        %1783 = vmatprep.mubr.bf16.mxu0 %v500
        %1784 = vmatmul.mubr.bf16.gmra.mrb[0].mxu0 %v499
        %v1785 = vpop.f32.mrb[0].mxu0
        %v1786 = vadd.f32 0.0, %v1785
        %v1787 = vpop.f32.mrb[0].mxu0
        %v1788 = vpop.f32.mrb[0].mxu0
        %v1789 = vpop.f32.mrb[0].mxu0
        %1790 = vdwg.mxu0
        %1791 = vmatprep.subr.bf16.mxu0 0
        %1792 = vmatpush1.bf16.msra.mxu0 %v1661
        %1793 = vmatprep.subr.bf16.mxu0 0
        %1794 = vmatpush1.bf16.msra.mxu0 %v1662
        %1795 = vmatprep.subr.bf16.mxu0 0
        %1796 = vmatpush1.bf16.msra.mxu0 %v1663
        %1797 = vmatprep.subr.bf16.mxu0 0
        %1798 = vmatpush1.bf16.msra.mxu0 %v1664
        %1799 = vmatprep.subr.bf16.mxu0 0
        %1800 = vmatpush1.bf16.msra.mxu0 %v1665
        %1801 = vmatprep.subr.bf16.mxu0 0
        %1802 = vmatpush1.bf16.msra.mxu0 %v1666
        %1803 = vmatprep.subr.bf16.mxu0 0
        %1804 = vmatpush1.bf16.msra.mxu0 %v1667
        %1805 = vmatprep.subr.bf16.mxu0 0
        %1806 = vmatpush1.bf16.msra.mxu0 %v1668
        %1807 = vmatprep.subr.bf16.mxu0 0
        %1808 = vmatpush1.bf16.msra.mxu0 %v1669
        %1809 = vmatprep.subr.bf16.mxu0 0
        %1810 = vmatpush1.bf16.msra.mxu0 %v1670
        %1811 = vmatprep.subr.bf16.mxu0 0
        %1812 = vmatpush1.bf16.msra.mxu0 %v1671
        %1813 = vmatprep.subr.bf16.mxu0 0
        %1814 = vmatpush1.bf16.msra.mxu0 %v1672
        %1815 = vmatprep.subr.bf16.mxu0 0
        %1816 = vmatpush1.bf16.msra.mxu0 %v1673
        %1817 = vmatprep.subr.bf16.mxu0 0
        %1818 = vmatpush1.bf16.msra.mxu0 %v1674
        %1819 = vmatprep.subr.bf16.mxu0 0
        %1820 = vmatpush1.bf16.msra.mxu0 %v1675
        %1821 = vmatprep.subr.bf16.mxu0 0
        %1822 = vmatpush1.bf16.msra.mxu0 %v1676
        %1823 = vmatprep.mubr.bf16.mxu0 %v495
        %1824 = vmatmul.mubr.bf16.gmra.mrb[0].mxu0 %v494
        %v1825 = vpop.f32.mrb[0].mxu0
        %v1826 = vadd.f32 %v1778, %v1825
        %v1827 = vpop.f32.mrb[0].mxu0
        %v1828 = vpop.f32.mrb[0].mxu0
        %v1829 = vadd.f32 %v1781, %v1828
        %v1830 = vpop.f32.mrb[0].mxu0
        %1831 = vmatprep.mubr.bf16.mxu0 %v502
        %1832 = vmatmul.mubr.bf16.gmra.mrb[0].mxu0 %v501
        %v1833 = vpop.f32.mrb[0].mxu0
        %v1834 = vadd.f32 %v1786, %v1833
        %v1835 = vpop.f32.mrb[0].mxu0
        %v1836 = vpop.f32.mrb[0].mxu0
        %v1837 = vpop.f32.mrb[0].mxu0
        %1838 = vdwg.mxu0
        %1839 = vmatprep.subr.bf16.mxu0 0
        %1840 = vmatpush1.bf16.msra.mxu0 %v1677
        %1841 = vmatprep.subr.bf16.mxu0 0
        %1842 = vmatpush1.bf16.msra.mxu0 %v1678
        %1843 = vmatprep.subr.bf16.mxu0 0
        %1844 = vmatpush1.bf16.msra.mxu0 %v1679
        %1845 = vmatprep.subr.bf16.mxu0 0
        %1846 = vmatpush1.bf16.msra.mxu0 %v1680
        %1847 = vmatprep.subr.bf16.mxu0 0
        %1848 = vmatpush1.bf16.msra.mxu0 %v1681
        %1849 = vmatprep.subr.bf16.mxu0 0
        %1850 = vmatpush1.bf16.msra.mxu0 %v1682
        %1851 = vmatprep.subr.bf16.mxu0 0
        %1852 = vmatpush1.bf16.msra.mxu0 %v1683
        %1853 = vmatprep.subr.bf16.mxu0 0
        %1854 = vmatpush1.bf16.msra.mxu0 %v1684
        %1855 = vmatprep.subr.bf16.mxu0 0
        %1856 = vmatpush1.bf16.msra.mxu0 %v1685
        %1857 = vmatprep.subr.bf16.mxu0 0
        %1858 = vmatpush1.bf16.msra.mxu0 %v1686
        %1859 = vmatprep.subr.bf16.mxu0 0
        %1860 = vmatpush1.bf16.msra.mxu0 %v1687
        %1861 = vmatprep.subr.bf16.mxu0 0
        %1862 = vmatpush1.bf16.msra.mxu0 %v1688
        %1863 = vmatprep.subr.bf16.mxu0 0
        %1864 = vmatpush1.bf16.msra.mxu0 %v1689
        %1865 = vmatprep.subr.bf16.mxu0 0
        %1866 = vmatpush1.bf16.msra.mxu0 %v1690
        %1867 = vmatprep.subr.bf16.mxu0 0
        %1868 = vmatpush1.bf16.msra.mxu0 %v1691
        %1869 = vmatprep.subr.bf16.mxu0 0
        %1870 = vmatpush1.bf16.msra.mxu0 %v1692
        %1871 = vmatprep.mubr.bf16.mxu0 %v497
        %1872 = vmatmul.mubr.bf16.gmra.mrb[0].mxu0 %v496
        %v1873 = vpop.f32.mrb[0].mxu0
        %v1874 = vadd.f32 %v1826, %v1873
        %v1875 = vpop.f32.mrb[0].mxu0
        %v1876 = vpop.f32.mrb[0].mxu0
        %v1877 = vadd.f32 %v1829, %v1876
        %v1878 = vpop.f32.mrb[0].mxu0
        %1879 = vmatprep.mubr.bf16.mxu0 %v504
        %1880 = vmatmul.mubr.bf16.gmra.mrb[0].mxu0 %v503
        %v1881 = vpop.f32.mrb[0].mxu0
        %v1882 = vadd.f32 %v1834, %v1881
        %v1883 = vpop.f32.mrb[0].mxu0
        %v1884 = vpop.f32.mrb[0].mxu0
        %v1885 = vpop.f32.mrb[0].mxu0
        %1886 = vdwg.mxu0
        %1887 = vmatprep.subr.bf16.mxu0 0
        %1888 = vmatpush1.bf16.msra.mxu0 %v1693
        %1889 = vmatprep.subr.bf16.mxu0 0
        %1890 = vmatpush1.bf16.msra.mxu0 0
        %1891 = vmatprep.subr.bf16.mxu0 0
        %1892 = vmatpush1.bf16.msra.mxu0 0
        %1893 = vmatprep.subr.bf16.mxu0 0
        %1894 = vmatpush1.bf16.msra.mxu0 0
        %1895 = vmatprep.subr.bf16.mxu0 0
        %1896 = vmatpush1.bf16.msra.mxu0 0
        %1897 = vmatprep.subr.bf16.mxu0 0
        %1898 = vmatpush1.bf16.msra.mxu0 0
        %1899 = vmatprep.subr.bf16.mxu0 0
        %1900 = vmatpush1.bf16.msra.mxu0 0
        %1901 = vmatprep.subr.bf16.mxu0 0
        %1902 = vmatpush1.bf16.msra.mxu0 0
        %1903 = vmatprep.subr.bf16.mxu0 0
        %1904 = vmatpush1.bf16.msra.mxu0 0
        %1905 = vmatprep.subr.bf16.mxu0 0
        %1906 = vmatpush1.bf16.msra.mxu0 0
        %1907 = vmatprep.subr.bf16.mxu0 0
        %1908 = vmatpush1.bf16.msra.mxu0 0
        %1909 = vmatprep.subr.bf16.mxu0 0
        %1910 = vmatpush1.bf16.msra.mxu0 0
        %1911 = vmatprep.subr.bf16.mxu0 0
        %1912 = vmatpush1.bf16.msra.mxu0 0
        %1913 = vmatprep.subr.bf16.mxu0 0
        %1914 = vmatpush1.bf16.msra.mxu0 0
        %1915 = vmatprep.subr.bf16.mxu0 0
        %1916 = vmatpush1.bf16.msra.mxu0 0
        %1917 = vmatprep.subr.bf16.mxu0 0
        %1918 = vmatpush1.bf16.msra.mxu0 0
        %1919 = vmatprep.mubr.bf16.mxu0 0
        %1920 = vmatmul.mubr.bf16.gmra.mrb[0].mxu0 %v1154
        %v1921 = vpop.f32.mrb[0].mxu0
        %v1922 = vadd.f32 %v1874, %v1921
        %v1923 = vpop.f32.mrb[0].mxu0
        %v1924 = vpop.f32.mrb[0].mxu0
        %v1925 = vadd.f32 %v1877, %v1924
        %v1926 = vpop.f32.mrb[0].mxu0
        %1927 = vmatprep.mubr.bf16.mxu0 0
        %1928 = vmatmul.mubr.bf16.gmra.mrb[0].mxu0 %v1157
        %v1929 = vpop.f32.mrb[0].mxu0
        %v1930 = vadd.f32 %v1882, %v1929
        %v1931 = vpop.f32.mrb[0].mxu0
        %v1932 = vpop.f32.mrb[0].mxu0
        %v1933 = vpop.f32.mrb[0].mxu0
        %1934 = vdwg.mxu0
        %v1935 = vadd.f32 %v1338, %v1922
        %v1936 = vadd.f32 %v1341, %v1925
        %v1937 = vadd.f32 %v1346, %v1930
        %v1938 = vld [vmem:[%s3] sm:$0x1]
        %v1940 = vlaneseq
        %v1941 = vshrl.u32 %v1940, 7
        %v1942 = vsub.s32 0, %v1941
        %v1943 = vrot.slane %v1938, %v1942
        %v1945 = vadd.f32 %v1935, %v1943
        %v1946 = vadd.f32 %v1936, %v1943
        %v1947 = vadd.f32 %v1937, %v1943
        %v1948 = vtanh.pop %v1945
        %v1949 = vtanh.pop %v1946
        %v1950 = vtanh.pop %v1947
        %v1951 = vpack.c.bf16 %v1949, %v1948
        %v1952 = vpack.c.bf16 %v1950, %v1950
        %v1953 = vunpack.c.l.bf16 %v1951
        %v1954 = vunpack.c.h.bf16 %v1951
        %v1955 = vunpack.c.l.bf16 %v1952
        %v1956 = vsub.f32 %v1948, %v1953
        %v1957 = vsub.f32 %v1949, %v1954
        %v1958 = vsub.f32 %v1950, %v1955
        %v1959 = vpack.c.bf16 %v1957, %v1956
        %v1960 = vpack.c.bf16 %v1958, %v1958
        %v1961 = vld [vmem:[%s4] sm:$0xf]
        %v1962 = vld [vmem:[%s4 + $0x4] sm:$0xf]
        %v1963 = vld [vmem:[%s4 + $0x8] sm:$0xf]
        %v1964 = vld [vmem:[%s4 + $0xc] sm:$0xf]
        %v1965 = vld [vmem:[%s4 + $0x10] sm:$0xf]
        %v1966 = vld [vmem:[%s4 + $0x14] sm:$0xf]
        %v1967 = vld [vmem:[%s4 + $0x18] sm:$0x1]
        %v1975 = vunpack.c.l.b16 %v1961
        %v1976 = vunpack.c.l.b16 %v1962
        %v1977 = vunpack.c.l.b16 %v1963
        %v1978 = vunpack.c.l.b16 %v1964
        %v1979 = vunpack.c.l.b16 %v1965
        %v1980 = vunpack.c.l.b16 %v1966
        %v1981 = vunpack.c.l.b16 %v1967
        %v1982 = vpack.c.b16 %v1976, %v1975
        %v1983 = vpack.c.b16 %v1978, %v1977
        %v1984 = vpack.c.b16 %v1980, %v1979
        %v1985 = vpack.c.b16 %v1981, %v1981
        %vm1989 = vcmask 408576
        %v1991 = vsel %vm1989, %v1959, 0
        %v1994 = vsel %vm1989, %v1960, 0
        %vm1996 = vcmask 1040384
        %v1998 = vsel %vm1996, %v1985, 0
        %2000 = vmatprep.subr.bf16.mxu0 0
        %2001 = vmatpush1.bf16.msra.mxu0 %v1982
        %2002 = vmatprep.subr.bf16.mxu0 0
        %2003 = vmatpush1.bf16.msra.mxu0 %v1983
        %2004 = vmatprep.subr.bf16.mxu0 0
        %2005 = vmatpush1.bf16.msra.mxu0 %v1984
        %2006 = vmatprep.subr.bf16.mxu0 0
        %2007 = vmatpush1.bf16.msra.mxu0 %v1998
        %2008 = vmatprep.subr.bf16.mxu0 0
        %2009 = vmatpush1.bf16.msra.mxu0 0
        %2010 = vmatprep.subr.bf16.mxu0 0
        %2011 = vmatpush1.bf16.msra.mxu0 0
        %2012 = vmatprep.subr.bf16.mxu0 0
        %2013 = vmatpush1.bf16.msra.mxu0 0
        %2014 = vmatprep.subr.bf16.mxu0 0
        %2015 = vmatpush1.bf16.msra.mxu0 0
        %2016 = vmatprep.subr.bf16.mxu0 0
        %2017 = vmatpush1.bf16.msra.mxu0 0
        %2018 = vmatprep.subr.bf16.mxu0 0
        %2019 = vmatpush1.bf16.msra.mxu0 0
        %2020 = vmatprep.subr.bf16.mxu0 0
        %2021 = vmatpush1.bf16.msra.mxu0 0
        %2022 = vmatprep.subr.bf16.mxu0 0
        %2023 = vmatpush1.bf16.msra.mxu0 0
        %2024 = vmatprep.subr.bf16.mxu0 0
        %2025 = vmatpush1.bf16.msra.mxu0 0
        %2026 = vmatprep.subr.bf16.mxu0 0
        %2027 = vmatpush1.bf16.msra.mxu0 0
        %2028 = vmatprep.subr.bf16.mxu0 0
        %2029 = vmatpush1.bf16.msra.mxu0 0
        %2030 = vmatprep.subr.bf16.mxu0 0
        %2031 = vmatpush1.bf16.msra.mxu0 0
        %2032 = vmatprep.mubr.bf16.mxu0 0
        %2033 = vmatmul.mubr.bf16.gmra.mrb[0].mxu0 %v1991
        %v2034 = vpop.f32.mrb[0].mxu0
        %v2035 = vadd.f32 0.0, %v2034
        %v2036 = vpop.f32.mrb[0].mxu0
        %v2037 = vpop.f32.mrb[0].mxu0
        %v2038 = vadd.f32 0.0, %v2037
        %v2039 = vpop.f32.mrb[0].mxu0
        %2040 = vmatprep.mubr.bf16.mxu0 0
        %2041 = vmatmul.mubr.bf16.gmra.mrb[0].mxu0 %v1994
        %v2042 = vpop.f32.mrb[0].mxu0
        %v2043 = vadd.f32 0.0, %v2042
        %v2044 = vpop.f32.mrb[0].mxu0
        %v2045 = vpop.f32.mrb[0].mxu0
        %v2046 = vpop.f32.mrb[0].mxu0
        %2047 = vdwg.mxu0
        %v2049 = vsel %vm1989, %v1951, 0
        %v2052 = vsel %vm1989, %v1952, 0
        %2054 = vmatprep.subr.bf16.mxu0 0
        %2055 = vmatpush1.bf16.msra.mxu0 %v1982
        %2056 = vmatprep.subr.bf16.mxu0 0
        %2057 = vmatpush1.bf16.msra.mxu0 %v1983
        %2058 = vmatprep.subr.bf16.mxu0 0
        %2059 = vmatpush1.bf16.msra.mxu0 %v1984
        %2060 = vmatprep.subr.bf16.mxu0 0
        %2061 = vmatpush1.bf16.msra.mxu0 %v1998
        %2062 = vmatprep.subr.bf16.mxu0 0
        %2063 = vmatpush1.bf16.msra.mxu0 0
        %2064 = vmatprep.subr.bf16.mxu0 0
        %2065 = vmatpush1.bf16.msra.mxu0 0
        %2066 = vmatprep.subr.bf16.mxu0 0
        %2067 = vmatpush1.bf16.msra.mxu0 0
        %2068 = vmatprep.subr.bf16.mxu0 0
        %2069 = vmatpush1.bf16.msra.mxu0 0
        %2070 = vmatprep.subr.bf16.mxu0 0
        %2071 = vmatpush1.bf16.msra.mxu0 0
        %2072 = vmatprep.subr.bf16.mxu0 0
        %2073 = vmatpush1.bf16.msra.mxu0 0
        %2074 = vmatprep.subr.bf16.mxu0 0
        %2075 = vmatpush1.bf16.msra.mxu0 0
        %2076 = vmatprep.subr.bf16.mxu0 0
        %2077 = vmatpush1.bf16.msra.mxu0 0
        %2078 = vmatprep.subr.bf16.mxu0 0
        %2079 = vmatpush1.bf16.msra.mxu0 0
        %2080 = vmatprep.subr.bf16.mxu0 0
        %2081 = vmatpush1.bf16.msra.mxu0 0
        %2082 = vmatprep.subr.bf16.mxu0 0
        %2083 = vmatpush1.bf16.msra.mxu0 0
        %2084 = vmatprep.subr.bf16.mxu0 0
        %2085 = vmatpush1.bf16.msra.mxu0 0
        %2086 = vmatprep.mubr.bf16.mxu0 0
        %2087 = vmatmul.mubr.bf16.gmra.mrb[0].mxu0 %v2049
        %v2088 = vpop.f32.mrb[0].mxu0
        %v2089 = vadd.f32 %v2035, %v2088
        %v2090 = vpop.f32.mrb[0].mxu0
        %v2091 = vpop.f32.mrb[0].mxu0
        %v2092 = vadd.f32 %v2038, %v2091
        %v2093 = vpop.f32.mrb[0].mxu0
        %2094 = vmatprep.mubr.bf16.mxu0 0
        %2095 = vmatmul.mubr.bf16.gmra.mrb[0].mxu0 %v2052
        %v2096 = vpop.f32.mrb[0].mxu0
        %v2097 = vadd.f32 %v2043, %v2096
        %v2098 = vpop.f32.mrb[0].mxu0
        %v2099 = vpop.f32.mrb[0].mxu0
        %v2100 = vpop.f32.mrb[0].mxu0
        %2101 = vdwg.mxu0
        %v2102 = vld [vmem:[%s5] sm:$0xf]
        %v2103 = vld [vmem:[%s5 + $0x4] sm:$0xf]
        %v2104 = vld [vmem:[%s5 + $0x8] sm:$0xf]
        %v2105 = vld [vmem:[%s5 + $0xc] sm:$0xf]
        %v2106 = vld [vmem:[%s5 + $0x10] sm:$0xf]
        %v2107 = vld [vmem:[%s5 + $0x14] sm:$0xf]
        %v2108 = vld [vmem:[%s5 + $0x18] sm:$0x1]
        %v2116 = vunpack.c.l.b16 %v2102
        %v2117 = vunpack.c.l.b16 %v2103
        %v2118 = vunpack.c.l.b16 %v2104
        %v2119 = vunpack.c.l.b16 %v2105
        %v2120 = vunpack.c.l.b16 %v2106
        %v2121 = vunpack.c.l.b16 %v2107
        %v2122 = vunpack.c.l.b16 %v2108
        %v2123 = vpack.c.b16 %v2117, %v2116
        %v2124 = vpack.c.b16 %v2119, %v2118
        %v2125 = vpack.c.b16 %v2121, %v2120
        %v2126 = vpack.c.b16 %v2122, %v2122
        %v2131 = vsel %vm1996, %v2126, 0
        %2133 = vmatprep.subr.bf16.mxu0 0
        %2134 = vmatpush1.bf16.msra.mxu0 %v2123
        %2135 = vmatprep.subr.bf16.mxu0 0
        %2136 = vmatpush1.bf16.msra.mxu0 %v2124
        %2137 = vmatprep.subr.bf16.mxu0 0
        %2138 = vmatpush1.bf16.msra.mxu0 %v2125
        %2139 = vmatprep.subr.bf16.mxu0 0
        %2140 = vmatpush1.bf16.msra.mxu0 %v2131
        %2141 = vmatprep.subr.bf16.mxu0 0
        %2142 = vmatpush1.bf16.msra.mxu0 0
        %2143 = vmatprep.subr.bf16.mxu0 0
        %2144 = vmatpush1.bf16.msra.mxu0 0
        %2145 = vmatprep.subr.bf16.mxu0 0
        %2146 = vmatpush1.bf16.msra.mxu0 0
        %2147 = vmatprep.subr.bf16.mxu0 0
        %2148 = vmatpush1.bf16.msra.mxu0 0
        %2149 = vmatprep.subr.bf16.mxu0 0
        %2150 = vmatpush1.bf16.msra.mxu0 0
        %2151 = vmatprep.subr.bf16.mxu0 0
        %2152 = vmatpush1.bf16.msra.mxu0 0
        %2153 = vmatprep.subr.bf16.mxu0 0
        %2154 = vmatpush1.bf16.msra.mxu0 0
        %2155 = vmatprep.subr.bf16.mxu0 0
        %2156 = vmatpush1.bf16.msra.mxu0 0
        %2157 = vmatprep.subr.bf16.mxu0 0
        %2158 = vmatpush1.bf16.msra.mxu0 0
        %2159 = vmatprep.subr.bf16.mxu0 0
        %2160 = vmatpush1.bf16.msra.mxu0 0
        %2161 = vmatprep.subr.bf16.mxu0 0
        %2162 = vmatpush1.bf16.msra.mxu0 0
        %2163 = vmatprep.subr.bf16.mxu0 0
        %2164 = vmatpush1.bf16.msra.mxu0 0
        %2165 = vmatprep.mubr.bf16.mxu0 0
        %2166 = vmatmul.mubr.bf16.gmra.mrb[0].mxu0 %v2049
        %v2167 = vpop.f32.mrb[0].mxu0
        %v2168 = vadd.f32 0.0, %v2167
        %v2169 = vpop.f32.mrb[0].mxu0
        %v2170 = vpop.f32.mrb[0].mxu0
        %v2171 = vadd.f32 0.0, %v2170
        %v2172 = vpop.f32.mrb[0].mxu0
        %2173 = vmatprep.mubr.bf16.mxu0 0
        %2174 = vmatmul.mubr.bf16.gmra.mrb[0].mxu0 %v2052
        %v2175 = vpop.f32.mrb[0].mxu0
        %v2176 = vadd.f32 0.0, %v2175
        %v2177 = vpop.f32.mrb[0].mxu0
        %v2178 = vpop.f32.mrb[0].mxu0
        %v2179 = vpop.f32.mrb[0].mxu0
        %2180 = vdwg.mxu0
        %v2181 = vadd.f32 %v2089, %v2168
        %v2182 = vadd.f32 %v2092, %v2171
        %v2183 = vadd.f32 %v2097, %v2176
        %v2184 = vld [vmem:[%s6] sm:$0x1]
        %v2186 = vlaneseq
        %v2187 = vshrl.u32 %v2186, 7
        %v2188 = vsub.s32 0, %v2187
        %v2189 = vrot.slane %v2184, %v2188
        %v2191 = vadd.f32 %v2181, %v2189
        %v2192 = vadd.f32 %v2182, %v2189
        %v2193 = vadd.f32 %v2183, %v2189
        %v2194 = vtanh.pop %v2191
        %v2195 = vtanh.pop %v2192
        %v2196 = vtanh.pop %v2193
        %v2197 = vpack.c.bf16 %v2195, %v2194
        %v2198 = vpack.c.bf16 %v2196, %v2196
        %v2199 = vunpack.c.l.bf16 %v2197
        %v2200 = vunpack.c.h.bf16 %v2197
        %v2201 = vunpack.c.l.bf16 %v2198
        %v2202 = vsub.f32 %v2194, %v2199
        %v2203 = vsub.f32 %v2195, %v2200
        %v2204 = vsub.f32 %v2196, %v2201
        %v2205 = vpack.c.bf16 %v2203, %v2202
        %v2206 = vpack.c.bf16 %v2204, %v2204
        %v2207 = vld [vmem:[%s7] sm:$0xf]
        %v2208 = vld [vmem:[%s7 + $0x4] sm:$0xf]
        %v2209 = vld [vmem:[%s7 + $0x8] sm:$0xf]
        %v2210 = vld [vmem:[%s7 + $0xc] sm:$0xf]
        %v2211 = vld [vmem:[%s7 + $0x10] sm:$0xf]
        %v2212 = vld [vmem:[%s7 + $0x14] sm:$0xf]
        %v2213 = vld [vmem:[%s7 + $0x18] sm:$0x1]
        %v2221 = vunpack.c.l.b16 %v2207
        %v2222 = vunpack.c.l.b16 %v2208
        %v2223 = vunpack.c.l.b16 %v2209
        %v2224 = vunpack.c.l.b16 %v2210
        %v2225 = vunpack.c.l.b16 %v2211
        %v2226 = vunpack.c.l.b16 %v2212
        %v2227 = vunpack.c.l.b16 %v2213
        %v2228 = vpack.c.b16 %v2222, %v2221
        %v2229 = vpack.c.b16 %v2224, %v2223
        %v2230 = vpack.c.b16 %v2226, %v2225
        %v2231 = vpack.c.b16 %v2227, %v2227
        %v2236 = vsel %vm1989, %v2205, 0
        %v2239 = vsel %vm1989, %v2206, 0
        %v2242 = vsel %vm1996, %v2231, 0
        %2244 = vmatprep.subr.bf16.mxu0 0
        %2245 = vmatpush1.bf16.msra.mxu0 %v2228
        %2246 = vmatprep.subr.bf16.mxu0 0
        %2247 = vmatpush1.bf16.msra.mxu0 %v2229
        %2248 = vmatprep.subr.bf16.mxu0 0
        %2249 = vmatpush1.bf16.msra.mxu0 %v2230
        %2250 = vmatprep.subr.bf16.mxu0 0
        %2251 = vmatpush1.bf16.msra.mxu0 %v2242
        %2252 = vmatprep.subr.bf16.mxu0 0
        %2253 = vmatpush1.bf16.msra.mxu0 0
        %2254 = vmatprep.subr.bf16.mxu0 0
        %2255 = vmatpush1.bf16.msra.mxu0 0
        %2256 = vmatprep.subr.bf16.mxu0 0
        %2257 = vmatpush1.bf16.msra.mxu0 0
        %2258 = vmatprep.subr.bf16.mxu0 0
        %2259 = vmatpush1.bf16.msra.mxu0 0
        %2260 = vmatprep.subr.bf16.mxu0 0
        %2261 = vmatpush1.bf16.msra.mxu0 0
        %2262 = vmatprep.subr.bf16.mxu0 0
        %2263 = vmatpush1.bf16.msra.mxu0 0
        %2264 = vmatprep.subr.bf16.mxu0 0
        %2265 = vmatpush1.bf16.msra.mxu0 0
        %2266 = vmatprep.subr.bf16.mxu0 0
        %2267 = vmatpush1.bf16.msra.mxu0 0
        %2268 = vmatprep.subr.bf16.mxu0 0
        %2269 = vmatpush1.bf16.msra.mxu0 0
        %2270 = vmatprep.subr.bf16.mxu0 0
        %2271 = vmatpush1.bf16.msra.mxu0 0
        %2272 = vmatprep.subr.bf16.mxu0 0
        %2273 = vmatpush1.bf16.msra.mxu0 0
        %2274 = vmatprep.subr.bf16.mxu0 0
        %2275 = vmatpush1.bf16.msra.mxu0 0
        %2276 = vmatprep.mubr.bf16.mxu0 0
        %2277 = vmatmul.mubr.bf16.gmra.mrb[0].mxu0 %v2236
        %v2278 = vpop.f32.mrb[0].mxu0
        %v2279 = vadd.f32 0.0, %v2278
        %v2280 = vpop.f32.mrb[0].mxu0
        %v2281 = vpop.f32.mrb[0].mxu0
        %v2282 = vadd.f32 0.0, %v2281
        %v2283 = vpop.f32.mrb[0].mxu0
        %2284 = vmatprep.mubr.bf16.mxu0 0
        %2285 = vmatmul.mubr.bf16.gmra.mrb[0].mxu0 %v2239
        %v2286 = vpop.f32.mrb[0].mxu0
        %v2287 = vadd.f32 0.0, %v2286
        %v2288 = vpop.f32.mrb[0].mxu0
        %v2289 = vpop.f32.mrb[0].mxu0
        %v2290 = vpop.f32.mrb[0].mxu0
        %2291 = vdwg.mxu0
        %v2293 = vsel %vm1989, %v2197, 0
        %v2296 = vsel %vm1989, %v2198, 0
        %2298 = vmatprep.subr.bf16.mxu0 0
        %2299 = vmatpush1.bf16.msra.mxu0 %v2228
        %2300 = vmatprep.subr.bf16.mxu0 0
        %2301 = vmatpush1.bf16.msra.mxu0 %v2229
        %2302 = vmatprep.subr.bf16.mxu0 0
        %2303 = vmatpush1.bf16.msra.mxu0 %v2230
        %2304 = vmatprep.subr.bf16.mxu0 0
        %2305 = vmatpush1.bf16.msra.mxu0 %v2242
        %2306 = vmatprep.subr.bf16.mxu0 0
        %2307 = vmatpush1.bf16.msra.mxu0 0
        %2308 = vmatprep.subr.bf16.mxu0 0
        %2309 = vmatpush1.bf16.msra.mxu0 0
        %2310 = vmatprep.subr.bf16.mxu0 0
        %2311 = vmatpush1.bf16.msra.mxu0 0
        %2312 = vmatprep.subr.bf16.mxu0 0
        %2313 = vmatpush1.bf16.msra.mxu0 0
        %2314 = vmatprep.subr.bf16.mxu0 0
        %2315 = vmatpush1.bf16.msra.mxu0 0
        %2316 = vmatprep.subr.bf16.mxu0 0
        %2317 = vmatpush1.bf16.msra.mxu0 0
        %2318 = vmatprep.subr.bf16.mxu0 0
        %2319 = vmatpush1.bf16.msra.mxu0 0
        %2320 = vmatprep.subr.bf16.mxu0 0
        %2321 = vmatpush1.bf16.msra.mxu0 0
        %2322 = vmatprep.subr.bf16.mxu0 0
        %2323 = vmatpush1.bf16.msra.mxu0 0
        %2324 = vmatprep.subr.bf16.mxu0 0
        %2325 = vmatpush1.bf16.msra.mxu0 0
        %2326 = vmatprep.subr.bf16.mxu0 0
        %2327 = vmatpush1.bf16.msra.mxu0 0
        %2328 = vmatprep.subr.bf16.mxu0 0
        %2329 = vmatpush1.bf16.msra.mxu0 0
        %2330 = vmatprep.mubr.bf16.mxu0 0
        %2331 = vmatmul.mubr.bf16.gmra.mrb[0].mxu0 %v2293
        %v2332 = vpop.f32.mrb[0].mxu0
        %v2333 = vadd.f32 %v2279, %v2332
        %v2334 = vpop.f32.mrb[0].mxu0
        %v2335 = vpop.f32.mrb[0].mxu0
        %v2336 = vadd.f32 %v2282, %v2335
        %v2337 = vpop.f32.mrb[0].mxu0
        %2338 = vmatprep.mubr.bf16.mxu0 0
        %2339 = vmatmul.mubr.bf16.gmra.mrb[0].mxu0 %v2296
        %v2340 = vpop.f32.mrb[0].mxu0
        %v2341 = vadd.f32 %v2287, %v2340
        %v2342 = vpop.f32.mrb[0].mxu0
        %v2343 = vpop.f32.mrb[0].mxu0
        %v2344 = vpop.f32.mrb[0].mxu0
        %2345 = vdwg.mxu0
        %v2346 = vld [vmem:[%s8] sm:$0xf]
        %v2347 = vld [vmem:[%s8 + $0x4] sm:$0xf]
        %v2348 = vld [vmem:[%s8 + $0x8] sm:$0xf]
        %v2349 = vld [vmem:[%s8 + $0xc] sm:$0xf]
        %v2350 = vld [vmem:[%s8 + $0x10] sm:$0xf]
        %v2351 = vld [vmem:[%s8 + $0x14] sm:$0xf]
        %v2352 = vld [vmem:[%s8 + $0x18] sm:$0x1]
        %v2360 = vunpack.c.l.b16 %v2346
        %v2361 = vunpack.c.l.b16 %v2347
        %v2362 = vunpack.c.l.b16 %v2348
        %v2363 = vunpack.c.l.b16 %v2349
        %v2364 = vunpack.c.l.b16 %v2350
        %v2365 = vunpack.c.l.b16 %v2351
        %v2366 = vunpack.c.l.b16 %v2352
        %v2367 = vpack.c.b16 %v2361, %v2360
        %v2368 = vpack.c.b16 %v2363, %v2362
        %v2369 = vpack.c.b16 %v2365, %v2364
        %v2370 = vpack.c.b16 %v2366, %v2366
        %v2375 = vsel %vm1996, %v2370, 0
        %2377 = vmatprep.subr.bf16.mxu0 0
        %2378 = vmatpush1.bf16.msra.mxu0 %v2367
        %2379 = vmatprep.subr.bf16.mxu0 0
        %2380 = vmatpush1.bf16.msra.mxu0 %v2368
        %2381 = vmatprep.subr.bf16.mxu0 0
        %2382 = vmatpush1.bf16.msra.mxu0 %v2369
        %2383 = vmatprep.subr.bf16.mxu0 0
        %2384 = vmatpush1.bf16.msra.mxu0 %v2375
        %2385 = vmatprep.subr.bf16.mxu0 0
        %2386 = vmatpush1.bf16.msra.mxu0 0
        %2387 = vmatprep.subr.bf16.mxu0 0
        %2388 = vmatpush1.bf16.msra.mxu0 0
        %2389 = vmatprep.subr.bf16.mxu0 0
        %2390 = vmatpush1.bf16.msra.mxu0 0
        %2391 = vmatprep.subr.bf16.mxu0 0
        %2392 = vmatpush1.bf16.msra.mxu0 0
        %2393 = vmatprep.subr.bf16.mxu0 0
        %2394 = vmatpush1.bf16.msra.mxu0 0
        %2395 = vmatprep.subr.bf16.mxu0 0
        %2396 = vmatpush1.bf16.msra.mxu0 0
        %2397 = vmatprep.subr.bf16.mxu0 0
        %2398 = vmatpush1.bf16.msra.mxu0 0
        %2399 = vmatprep.subr.bf16.mxu0 0
        %2400 = vmatpush1.bf16.msra.mxu0 0
        %2401 = vmatprep.subr.bf16.mxu0 0
        %2402 = vmatpush1.bf16.msra.mxu0 0
        %2403 = vmatprep.subr.bf16.mxu0 0
        %2404 = vmatpush1.bf16.msra.mxu0 0
        %2405 = vmatprep.subr.bf16.mxu0 0
        %2406 = vmatpush1.bf16.msra.mxu0 0
        %2407 = vmatprep.subr.bf16.mxu0 0
        %2408 = vmatpush1.bf16.msra.mxu0 0
        %2409 = vmatprep.mubr.bf16.mxu0 0
        %2410 = vmatmul.mubr.bf16.gmra.mrb[0].mxu0 %v2293
        %v2411 = vpop.f32.mrb[0].mxu0
        %v2412 = vadd.f32 0.0, %v2411
        %v2413 = vpop.f32.mrb[0].mxu0
        %v2414 = vpop.f32.mrb[0].mxu0
        %v2415 = vadd.f32 0.0, %v2414
        %v2416 = vpop.f32.mrb[0].mxu0
        %2417 = vmatprep.mubr.bf16.mxu0 0
        %2418 = vmatmul.mubr.bf16.gmra.mrb[0].mxu0 %v2296
        %v2419 = vpop.f32.mrb[0].mxu0
        %v2420 = vadd.f32 0.0, %v2419
        %v2421 = vpop.f32.mrb[0].mxu0
        %v2422 = vpop.f32.mrb[0].mxu0
        %v2423 = vpop.f32.mrb[0].mxu0
        %2424 = vdwg.mxu0
        %v2425 = vadd.f32 %v2333, %v2412
        %v2426 = vadd.f32 %v2336, %v2415
        %v2427 = vadd.f32 %v2341, %v2420
        %v2428 = vld [vmem:[%s9] sm:$0x1]
        %v2430 = vlaneseq
        %v2431 = vshrl.u32 %v2430, 7
        %v2432 = vsub.s32 0, %v2431
        %v2433 = vrot.slane %v2428, %v2432
        %v2435 = vadd.f32 %v2425, %v2433
        %v2436 = vadd.f32 %v2426, %v2433
        %v2437 = vadd.f32 %v2427, %v2433
        %v2438 = vmax.f32 %v2435, 0.0
        %v2439 = vmax.f32 %v2436, 0.0
        %v2440 = vmax.f32 %v2437, 0.0
        %v2441 = vpack.c.bf16 %v2439, %v2438
        %v2442 = vpack.c.bf16 %v2440, %v2440
        %v2443 = vunpack.c.l.bf16 %v2441
        %v2444 = vunpack.c.h.bf16 %v2441
        %v2445 = vunpack.c.l.bf16 %v2442
        %v2446 = vsub.f32 %v2438, %v2443
        %v2447 = vsub.f32 %v2439, %v2444
        %v2448 = vsub.f32 %v2440, %v2445
        %v2449 = vpack.c.bf16 %v2447, %v2446
        %v2450 = vpack.c.bf16 %v2448, %v2448
        %v2451 = vld [vmem:[%s10] sm:$0xf]
        %v2452 = vld [vmem:[%s10 + $0x4] sm:$0xf]
        %v2453 = vld [vmem:[%s10 + $0x8] sm:$0xf]
        %v2454 = vld [vmem:[%s10 + $0xc] sm:$0xf]
        %v2455 = vld [vmem:[%s10 + $0x10] sm:$0xf]
        %v2456 = vld [vmem:[%s10 + $0x14] sm:$0xf]
        %v2457 = vld [vmem:[%s10 + $0x18] sm:$0xf]
        %v2458 = vld [vmem:[%s10 + $0x1c] sm:$0xf]
        %v2459 = vld [vmem:[%s10 + $0x20] sm:$0xf]
        %v2460 = vld [vmem:[%s10 + $0x24] sm:$0xf]
        %v2461 = vld [vmem:[%s10 + $0x28] sm:$0xf]
        %v2462 = vld [vmem:[%s10 + $0x2c] sm:$0xf]
        %v2463 = vld [vmem:[%s10 + $0x30] sm:$0xf]
        %v2464 = vld [vmem:[%s10 + $0x34] sm:$0xf]
        %v2465 = vld [vmem:[%s10 + $0x38] sm:$0xf]
        %v2466 = vld [vmem:[%s10 + $0x3c] sm:$0xf]
        %v2483 = vunpack.c.l.b16 %v2451
        %v2484 = vunpack.c.l.b16 %v2452
        %v2485 = vunpack.c.l.b16 %v2453
        %v2486 = vunpack.c.l.b16 %v2454
        %v2487 = vunpack.c.l.b16 %v2455
        %v2488 = vunpack.c.l.b16 %v2456
        %v2489 = vunpack.c.l.b16 %v2457
        %v2490 = vunpack.c.l.b16 %v2458
        %v2491 = vunpack.c.l.b16 %v2459
        %v2492 = vunpack.c.l.b16 %v2460
        %v2493 = vunpack.c.l.b16 %v2461
        %v2494 = vunpack.c.l.b16 %v2462
        %v2495 = vunpack.c.l.b16 %v2463
        %v2496 = vunpack.c.l.b16 %v2464
        %v2497 = vunpack.c.l.b16 %v2465
        %v2498 = vunpack.c.l.b16 %v2466
        %v2499 = vpack.c.b16 %v2484, %v2483
        %v2500 = vpack.c.b16 %v2486, %v2485
        %v2501 = vpack.c.b16 %v2488, %v2487
        %v2502 = vpack.c.b16 %v2490, %v2489
        %v2503 = vpack.c.b16 %v2492, %v2491
        %v2504 = vpack.c.b16 %v2494, %v2493
        %v2505 = vpack.c.b16 %v2496, %v2495
        %v2506 = vpack.c.b16 %v2498, %v2497
        %2515 = vmatprep.subr.bf16.mxu0 0
        %2516 = vmatpush1.bf16.msra.mxu0 %v2499
        %2517 = vmatprep.subr.bf16.mxu0 0
        %2518 = vmatpush1.bf16.msra.mxu0 %v2500
        %2519 = vmatprep.subr.bf16.mxu0 0
        %2520 = vmatpush1.bf16.msra.mxu0 %v2501
        %2521 = vmatprep.subr.bf16.mxu0 0
        %2522 = vmatpush1.bf16.msra.mxu0 %v2502
        %2523 = vmatprep.subr.bf16.mxu0 0
        %2524 = vmatpush1.bf16.msra.mxu0 %v2503
        %2525 = vmatprep.subr.bf16.mxu0 0
        %2526 = vmatpush1.bf16.msra.mxu0 %v2504
        %2527 = vmatprep.subr.bf16.mxu0 0
        %2528 = vmatpush1.bf16.msra.mxu0 %v2505
        %2529 = vmatprep.subr.bf16.mxu0 0
        %2530 = vmatpush1.bf16.msra.mxu0 %v2506
        %2531 = vmatprep.subr.bf16.mxu0 0
        %2532 = vmatpush1.bf16.msra.mxu0 0
        %2533 = vmatprep.subr.bf16.mxu0 0
        %2534 = vmatpush1.bf16.msra.mxu0 0
        %2535 = vmatprep.subr.bf16.mxu0 0
        %2536 = vmatpush1.bf16.msra.mxu0 0
        %2537 = vmatprep.subr.bf16.mxu0 0
        %2538 = vmatpush1.bf16.msra.mxu0 0
        %2539 = vmatprep.subr.bf16.mxu0 0
        %2540 = vmatpush1.bf16.msra.mxu0 0
        %2541 = vmatprep.subr.bf16.mxu0 0
        %2542 = vmatpush1.bf16.msra.mxu0 0
        %2543 = vmatprep.subr.bf16.mxu0 0
        %2544 = vmatpush1.bf16.msra.mxu0 0
        %2545 = vmatprep.subr.bf16.mxu0 0
        %2546 = vmatpush1.bf16.msra.mxu0 0
        %2547 = vmatprep.mubr.bf16.mxu0 0
        %2548 = vmatmul.mubr.bf16.gmra.mrb[0].mxu0 %v2449
        %v2549 = vpop.f32.mrb[0].mxu0
        %v2550 = vadd.f32 0.0, %v2549
        %v2551 = vpop.f32.mrb[0].mxu0
        %v2552 = vpop.f32.mrb[0].mxu0
        %v2553 = vadd.f32 0.0, %v2552
        %v2554 = vpop.f32.mrb[0].mxu0
        %2555 = vmatprep.mubr.bf16.mxu0 0
        %2556 = vmatmul.mubr.bf16.gmra.mrb[0].mxu0 %v2450
        %v2557 = vpop.f32.mrb[0].mxu0
        %v2558 = vadd.f32 0.0, %v2557
        %v2559 = vpop.f32.mrb[0].mxu0
        %v2560 = vpop.f32.mrb[0].mxu0
        %v2561 = vpop.f32.mrb[0].mxu0
        %2562 = vdwg.mxu0
        %2563 = vmatprep.subr.bf16.mxu0 0
        %2564 = vmatpush1.bf16.msra.mxu0 %v2499
        %2565 = vmatprep.subr.bf16.mxu0 0
        %2566 = vmatpush1.bf16.msra.mxu0 %v2500
        %2567 = vmatprep.subr.bf16.mxu0 0
        %2568 = vmatpush1.bf16.msra.mxu0 %v2501
        %2569 = vmatprep.subr.bf16.mxu0 0
        %2570 = vmatpush1.bf16.msra.mxu0 %v2502
        %2571 = vmatprep.subr.bf16.mxu0 0
        %2572 = vmatpush1.bf16.msra.mxu0 %v2503
        %2573 = vmatprep.subr.bf16.mxu0 0
        %2574 = vmatpush1.bf16.msra.mxu0 %v2504
        %2575 = vmatprep.subr.bf16.mxu0 0
        %2576 = vmatpush1.bf16.msra.mxu0 %v2505
        %2577 = vmatprep.subr.bf16.mxu0 0
        %2578 = vmatpush1.bf16.msra.mxu0 %v2506
        %2579 = vmatprep.subr.bf16.mxu0 0
        %2580 = vmatpush1.bf16.msra.mxu0 0
        %2581 = vmatprep.subr.bf16.mxu0 0
        %2582 = vmatpush1.bf16.msra.mxu0 0
        %2583 = vmatprep.subr.bf16.mxu0 0
        %2584 = vmatpush1.bf16.msra.mxu0 0
        %2585 = vmatprep.subr.bf16.mxu0 0
        %2586 = vmatpush1.bf16.msra.mxu0 0
        %2587 = vmatprep.subr.bf16.mxu0 0
        %2588 = vmatpush1.bf16.msra.mxu0 0
        %2589 = vmatprep.subr.bf16.mxu0 0
        %2590 = vmatpush1.bf16.msra.mxu0 0
        %2591 = vmatprep.subr.bf16.mxu0 0
        %2592 = vmatpush1.bf16.msra.mxu0 0
        %2593 = vmatprep.subr.bf16.mxu0 0
        %2594 = vmatpush1.bf16.msra.mxu0 0
        %2595 = vmatprep.mubr.bf16.mxu0 0
        %2596 = vmatmul.mubr.bf16.gmra.mrb[0].mxu0 %v2441
        %v2597 = vpop.f32.mrb[0].mxu0
        %v2598 = vadd.f32 %v2550, %v2597
        %v2599 = vpop.f32.mrb[0].mxu0
        %v2600 = vpop.f32.mrb[0].mxu0
        %v2601 = vadd.f32 %v2553, %v2600
        %v2602 = vpop.f32.mrb[0].mxu0
        %2603 = vmatprep.mubr.bf16.mxu0 0
        %2604 = vmatmul.mubr.bf16.gmra.mrb[0].mxu0 %v2442
        %v2605 = vpop.f32.mrb[0].mxu0
        %v2606 = vadd.f32 %v2558, %v2605
        %v2607 = vpop.f32.mrb[0].mxu0
        %v2608 = vpop.f32.mrb[0].mxu0
        %v2609 = vpop.f32.mrb[0].mxu0
        %2610 = vdwg.mxu0
        %v2611 = vld [vmem:[%s11] sm:$0xf]
        %v2612 = vld [vmem:[%s11 + $0x4] sm:$0xf]
        %v2613 = vld [vmem:[%s11 + $0x8] sm:$0xf]
        %v2614 = vld [vmem:[%s11 + $0xc] sm:$0xf]
        %v2615 = vld [vmem:[%s11 + $0x10] sm:$0xf]
        %v2616 = vld [vmem:[%s11 + $0x14] sm:$0xf]
        %v2617 = vld [vmem:[%s11 + $0x18] sm:$0xf]
        %v2618 = vld [vmem:[%s11 + $0x1c] sm:$0xf]
        %v2619 = vld [vmem:[%s11 + $0x20] sm:$0xf]
        %v2620 = vld [vmem:[%s11 + $0x24] sm:$0xf]
        %v2621 = vld [vmem:[%s11 + $0x28] sm:$0xf]
        %v2622 = vld [vmem:[%s11 + $0x2c] sm:$0xf]
        %v2623 = vld [vmem:[%s11 + $0x30] sm:$0xf]
        %v2624 = vld [vmem:[%s11 + $0x34] sm:$0xf]
        %v2625 = vld [vmem:[%s11 + $0x38] sm:$0xf]
        %v2626 = vld [vmem:[%s11 + $0x3c] sm:$0xf]
        %v2643 = vunpack.c.l.b16 %v2611
        %v2644 = vunpack.c.l.b16 %v2612
        %v2645 = vunpack.c.l.b16 %v2613
        %v2646 = vunpack.c.l.b16 %v2614
        %v2647 = vunpack.c.l.b16 %v2615
        %v2648 = vunpack.c.l.b16 %v2616
        %v2649 = vunpack.c.l.b16 %v2617
        %v2650 = vunpack.c.l.b16 %v2618
        %v2651 = vunpack.c.l.b16 %v2619
        %v2652 = vunpack.c.l.b16 %v2620
        %v2653 = vunpack.c.l.b16 %v2621
        %v2654 = vunpack.c.l.b16 %v2622
        %v2655 = vunpack.c.l.b16 %v2623
        %v2656 = vunpack.c.l.b16 %v2624
        %v2657 = vunpack.c.l.b16 %v2625
        %v2658 = vunpack.c.l.b16 %v2626
        %v2659 = vpack.c.b16 %v2644, %v2643
        %v2660 = vpack.c.b16 %v2646, %v2645
        %v2661 = vpack.c.b16 %v2648, %v2647
        %v2662 = vpack.c.b16 %v2650, %v2649
        %v2663 = vpack.c.b16 %v2652, %v2651
        %v2664 = vpack.c.b16 %v2654, %v2653
        %v2665 = vpack.c.b16 %v2656, %v2655
        %v2666 = vpack.c.b16 %v2658, %v2657
        %2675 = vmatprep.subr.bf16.mxu0 0
        %2676 = vmatpush1.bf16.msra.mxu0 %v2659
        %2677 = vmatprep.subr.bf16.mxu0 0
        %2678 = vmatpush1.bf16.msra.mxu0 %v2660
        %2679 = vmatprep.subr.bf16.mxu0 0
        %2680 = vmatpush1.bf16.msra.mxu0 %v2661
        %2681 = vmatprep.subr.bf16.mxu0 0
        %2682 = vmatpush1.bf16.msra.mxu0 %v2662
        %2683 = vmatprep.subr.bf16.mxu0 0
        %2684 = vmatpush1.bf16.msra.mxu0 %v2663
        %2685 = vmatprep.subr.bf16.mxu0 0
        %2686 = vmatpush1.bf16.msra.mxu0 %v2664
        %2687 = vmatprep.subr.bf16.mxu0 0
        %2688 = vmatpush1.bf16.msra.mxu0 %v2665
        %2689 = vmatprep.subr.bf16.mxu0 0
        %2690 = vmatpush1.bf16.msra.mxu0 %v2666
        %2691 = vmatprep.subr.bf16.mxu0 0
        %2692 = vmatpush1.bf16.msra.mxu0 0
        %2693 = vmatprep.subr.bf16.mxu0 0
        %2694 = vmatpush1.bf16.msra.mxu0 0
        %2695 = vmatprep.subr.bf16.mxu0 0
        %2696 = vmatpush1.bf16.msra.mxu0 0
        %2697 = vmatprep.subr.bf16.mxu0 0
        %2698 = vmatpush1.bf16.msra.mxu0 0
        %2699 = vmatprep.subr.bf16.mxu0 0
        %2700 = vmatpush1.bf16.msra.mxu0 0
        %2701 = vmatprep.subr.bf16.mxu0 0
        %2702 = vmatpush1.bf16.msra.mxu0 0
        %2703 = vmatprep.subr.bf16.mxu0 0
        %2704 = vmatpush1.bf16.msra.mxu0 0
        %2705 = vmatprep.subr.bf16.mxu0 0
        %2706 = vmatpush1.bf16.msra.mxu0 0
        %2707 = vmatprep.mubr.bf16.mxu0 0
        %2708 = vmatmul.mubr.bf16.gmra.mrb[0].mxu0 %v2441
        %v2709 = vpop.f32.mrb[0].mxu0
        %v2710 = vadd.f32 0.0, %v2709
        %v2711 = vpop.f32.mrb[0].mxu0
        %v2712 = vpop.f32.mrb[0].mxu0
        %v2713 = vadd.f32 0.0, %v2712
        %v2714 = vpop.f32.mrb[0].mxu0
        %2715 = vmatprep.mubr.bf16.mxu0 0
        %2716 = vmatmul.mubr.bf16.gmra.mrb[0].mxu0 %v2442
        %v2717 = vpop.f32.mrb[0].mxu0
        %v2718 = vadd.f32 0.0, %v2717
        %v2719 = vpop.f32.mrb[0].mxu0
        %v2720 = vpop.f32.mrb[0].mxu0
        %v2721 = vpop.f32.mrb[0].mxu0
        %2722 = vdwg.mxu0
        %v2723 = vadd.f32 %v2598, %v2710
        %v2724 = vadd.f32 %v2601, %v2713
        %v2725 = vadd.f32 %v2606, %v2718
        %v2726 = vld [vmem:[%s12] sm:$0x1]
        %v2728 = vlaneseq
        %v2729 = vshrl.u32 %v2728, 7
        %v2730 = vsub.s32 0, %v2729
        %v2731 = vrot.slane %v2726, %v2730
        %v2733 = vadd.f32 %v2723, %v2731
        %v2734 = vadd.f32 %v2724, %v2731
        %v2735 = vadd.f32 %v2725, %v2731
        %vm2736 = vcmask 80896
        %v2737 = vsel %vm2736, %v2733, -inf
        %2738 = vmax.xlane.f32.xlu0 %v2737
        %v2739 = vpop.xlane.xlu0 %2738
        %v2740 = vsel %vm2736, %v2734, -inf
        %2741 = vmax.xlane.f32.xlu0 %v2740
        %v2742 = vpop.xlane.xlu0 %2741
        %v2743 = vsel %vm2736, %v2735, -inf
        %2744 = vmax.xlane.f32.xlu0 %v2743
        %v2745 = vpop.xlane.xlu0 %2744
        %v2746 = vsub.f32 %v2733, %v2739
        %v2747 = vsub.f32 %v2734, %v2742
        %v2748 = vsub.f32 %v2735, %v2745
        %v2749 = vmul.f32 %v2746, 1.442695
        %v2750 = vpow.pop %v2749
        %v2751 = vmul.f32 %v2747, 1.442695
        %v2752 = vpow.pop %v2751
        %v2753 = vmul.f32 %v2748, 1.442695
        %v2754 = vpow.pop %v2753
        %v2755 = vsel %vm2736, %v2750, 0.0
        %2756 = vadd.xlane.f32.xlu0 %v2755
        %v2757 = vpop.xlane.xlu0 %2756
        %v2758 = vsel %vm2736, %v2752, 0.0
        %2759 = vadd.xlane.f32.xlu0 %v2758
        %v2760 = vpop.xlane.xlu0 %2759
        %v2761 = vsel %vm2736, %v2754, 0.0
        %2762 = vadd.xlane.f32.xlu0 %v2761
        %v2763 = vpop.xlane.xlu0 %2762
        %v2764 = vlog2.pop %v2757
        %v2765 = vmul.f32 %v2764, 0.6931472
        %v2766 = vlog2.pop %v2760
        %v2767 = vmul.f32 %v2766, 0.6931472
        %v2768 = vlog2.pop %v2763
        %v2769 = vmul.f32 %v2768, 0.6931472
        %v2770 = vsub.f32 %v2746, %v2765
        %v2771 = vsub.f32 %v2747, %v2767
        %v2772 = vsub.f32 %v2748, %v2769
        %2773 = vst.msk [vmem:[%s447] sm:$0xff] %vm2736, %v2770
        %2774 = vst.msk [vmem:[%s447 + $0x8] sm:$0xff] %vm2736, %v2771
        %2775 = vst.msk [vmem:[%s447 + $0x10] sm:$0xff] %vm2736, %v2772
        %s2776 = sand.u32 %s310, 1
        %s2777 = sand.u32 %s310, 1
        %s2778 = smul.addr %s2777, 24
        %s2779 = scalar_lea.vmem [#allocation2], %s2778
        // Predicated region
        $region73: #{tpu_custom_call.1} parent=71 // pred_check
          %p2780 = pneg %p320
        $region74: #{tpu_custom_call.1} parent=71 // pred_check_branch
          %2782 = sbr.rel (%p2780) target = $region76
        $region75: #{tpu_custom_call.1} parent=71 // pred_region
          %s2783 = smul.u32 3, %s24
          %s2784 = ssub.s32 5, %s2783
          %p2785 = scmp.lt.s32.totalorder %s2784, 3
          %s2786 = scalar_select %p2785, %s2784, 3
          %s2787 = smul.u32 128, %s2786
          %p2788 = scmp.ne.s32.totalorder 0, %s2787
          %s2789 = smul.addr %s2783, 8
          %s2790 = scalar_lea.vmem %s13, %s2789
          // Predicated region
          $region77: #{tpu_custom_call.1} parent=75 // pred_check
            %p2791 = pneg %p2788
          $region78: #{tpu_custom_call.1} parent=75 // pred_check_branch
            %2793 = sbr.rel (%p2791) target = $region80
          $region79: #{tpu_custom_call.1} parent=75 // pred_region
            // Predicated region
            $region81: #{tpu_custom_call.1} parent=79 // pred_check
              _
            $region82: #{tpu_custom_call.1} parent=79 // pred_check_branch
              %2795 = sbr.rel (0) target = $region84
            $region83: #{tpu_custom_call.1} parent=79 // pred_region
              // Predicated region
              $region103: #{tpu_custom_call.1} parent=83 // pred_check
                _
              $region104: #{tpu_custom_call.1} parent=83 // pred_check_branch
                %2849 = sbr.rel (0) target = $region106
              $region105: #{tpu_custom_call.1} parent=83 // pred_region
                %s2850 = sdiv.u32.pop %s2786, 3
                %s2851 = srem.u32.pop %s2786, 3
                // While loop
                $region107: #{tpu_custom_call.1} parent=105 // loop_pre_header
                  _
                $region108: #{tpu_custom_call.1} parent=105 // loop_header
                  %s2853 = sphi 0, %s2855
                  %p2854 = scmp.ge.s32.totalorder %s2853, %s2850
                  %s2858 = sphi 0, %s2869
                  %s2859 = sphi %s2779, %s2872
                  %s2860 = sphi %s2790, %s2873
                $region109: #{tpu_custom_call.1} parent=105 // loop_header_branch
                  %2857 = sbr.rel (%p2854) target = $region113
                $region110: #{tpu_custom_call.1} parent=105 // loop_body
                  %v2861 = vld [vmem:[%s2859] sm:$0xff]
                  %2862 = vst [vmem:[%s2860] sm:$0xff] %v2861
                  %v2863 = vld [vmem:[%s2859 + $0x8] sm:$0xff]
                  %2864 = vst [vmem:[%s2860 + $0x8] sm:$0xff] %v2863
                  %v2865 = vld [vmem:[%s2859 + $0x10] sm:$0xff]
                  %2866 = vst [vmem:[%s2860 + $0x10] sm:$0xff] %v2865
                  %s2867 = sadd.s32 1, %s2858
                  %p2868 = scmp.ge.s32.totalorder %s2867, %s2850
                  %s2869 = scalar_select %p2868, 0, %s2867
                  %s2870 = smul.u32 %s2869, 24
                  %s2871 = smul.u32 %s2869, 24
                  %s2872 = scalar_lea.vmem %s2779, %s2870 [#allocation2]
                  %s2873 = scalar_lea.vmem %s2790, %s2871
                $region111: #{tpu_custom_call.1} parent=105 // loop_footer
                  %s2855 = sadd.s32 %s2853, 1
                $region112: #{tpu_custom_call.1} parent=105 // loop_footer_branch
                  %2852 = sbr.rel target = $region108
                $region113: #{tpu_custom_call.1} parent=105 // loop_exit
                  _
                %s2874 = sdiv.u32.pop %s2786, 3
                %s2875 = srem.u32.pop %s2786, 3
                %s2876 = smul.u32 %s2874, 3
                %s2877 = smul.u32 8, %s2876
                %s2878 = scalar_lea.vmem %s2779, %s2877 [#allocation2]
                %s2879 = smul.u32 8, %s2876
                %s2880 = scalar_lea.vmem %s2790, %s2879
                // While loop
                $region114: #{tpu_custom_call.1} parent=105 // loop_pre_header
                  _
                $region115: #{tpu_custom_call.1} parent=105 // loop_header
                  %s2882 = sphi 0, %s2884
                  %p2883 = scmp.ge.s32.totalorder %s2882, %s2875
                  %s2887 = sphi 0, %s2894
                  %s2888 = sphi %s2878, %s2897
                  %s2889 = sphi %s2880, %s2898
                $region116: #{tpu_custom_call.1} parent=105 // loop_header_branch
                  %2886 = sbr.rel (%p2883) target = $region120
                $region117: #{tpu_custom_call.1} parent=105 // loop_body
                  %v2890 = vld [vmem:[%s2888] sm:$0xff]
                  %2891 = vst [vmem:[%s2889] sm:$0xff] %v2890
                  %s2892 = sadd.s32 1, %s2887
                  %p2893 = scmp.ge.s32.totalorder %s2892, %s2875
                  %s2894 = scalar_select %p2893, 0, %s2892
                  %s2895 = smul.u32 %s2894, 8
                  %s2896 = smul.u32 %s2894, 8
                  %s2897 = scalar_lea.vmem %s2878, %s2895 [#allocation2]
                  %s2898 = scalar_lea.vmem %s2880, %s2896
                $region118: #{tpu_custom_call.1} parent=105 // loop_footer
                  %s2884 = sadd.s32 %s2882, 1
                $region119: #{tpu_custom_call.1} parent=105 // loop_footer_branch
                  %2881 = sbr.rel target = $region115
                $region120: #{tpu_custom_call.1} parent=105 // loop_exit
                  _
              $region106: #{tpu_custom_call.1} parent=83 // pred_fallthru
                _
              // Predicated region
              $region121: #{tpu_custom_call.1} parent=83 // pred_check
                _
              $region122: #{tpu_custom_call.1} parent=83 // pred_check_branch
                %2900 = sbr.rel target = $region124
              $region123: #{tpu_custom_call.1} parent=83 // pred_region
                _
              $region124: #{tpu_custom_call.1} parent=83 // pred_fallthru
                _
            $region84: #{tpu_custom_call.1} parent=79 // pred_fallthru
              _
            // Predicated region
            $region85: #{tpu_custom_call.1} parent=79 // pred_check
              _
            $region86: #{tpu_custom_call.1} parent=79 // pred_check_branch
              %2797 = sbr.rel target = $region88
            $region87: #{tpu_custom_call.1} parent=79 // pred_region
              %s2799 = sdiv.u32.pop %s2786, 3
              %s2800 = srem.u32.pop %s2786, 3
              // While loop
              $region89: #{tpu_custom_call.1} parent=87 // loop_pre_header
                _
              $region90: #{tpu_custom_call.1} parent=87 // loop_header
                %s2802 = sphi 0, %s2804
                %p2803 = scmp.ge.s32.totalorder %s2802, %s2799
                %s2807 = sphi 0, %s2818
                %s2808 = sphi %s2779, %s2821
                %s2809 = sphi %s2790, %s2822
              $region91: #{tpu_custom_call.1} parent=87 // loop_header_branch
                %2806 = sbr.rel (%p2803) target = $region95
              $region92: #{tpu_custom_call.1} parent=87 // loop_body
                %v2810 = vld [vmem:[%s2808] sm:$0xff]
                %2811 = vst [vmem:[%s2809] sm:$0xff] %v2810
                %v2812 = vld [vmem:[%s2808 + $0x8] sm:$0xff]
                %2813 = vst [vmem:[%s2809 + $0x8] sm:$0xff] %v2812
                %v2814 = vld [vmem:[%s2808 + $0x10] sm:$0xff]
                %2815 = vst [vmem:[%s2809 + $0x10] sm:$0xff] %v2814
                %s2816 = sadd.s32 1, %s2807
                %p2817 = scmp.ge.s32.totalorder %s2816, %s2799
                %s2818 = scalar_select %p2817, 0, %s2816
                %s2819 = smul.u32 %s2818, 24
                %s2820 = smul.u32 %s2818, 24
                %s2821 = scalar_lea.vmem %s2779, %s2819 [#allocation2]
                %s2822 = scalar_lea.vmem %s2790, %s2820
              $region93: #{tpu_custom_call.1} parent=87 // loop_footer
                %s2804 = sadd.s32 %s2802, 1
              $region94: #{tpu_custom_call.1} parent=87 // loop_footer_branch
                %2801 = sbr.rel target = $region90
              $region95: #{tpu_custom_call.1} parent=87 // loop_exit
                _
              %s2823 = sdiv.u32.pop %s2786, 3
              %s2824 = srem.u32.pop %s2786, 3
              %s2825 = smul.u32 %s2823, 3
              %s2826 = smul.u32 8, %s2825
              %s2827 = scalar_lea.vmem %s2779, %s2826 [#allocation2]
              %s2828 = smul.u32 8, %s2825
              %s2829 = scalar_lea.vmem %s2790, %s2828
              // While loop
              $region96: #{tpu_custom_call.1} parent=87 // loop_pre_header
                _
              $region97: #{tpu_custom_call.1} parent=87 // loop_header
                %s2831 = sphi 0, %s2833
                %p2832 = scmp.ge.s32.totalorder %s2831, %s2824
                %s2836 = sphi 0, %s2843
                %s2837 = sphi %s2827, %s2846
                %s2838 = sphi %s2829, %s2847
              $region98: #{tpu_custom_call.1} parent=87 // loop_header_branch
                %2835 = sbr.rel (%p2832) target = $region102
              $region99: #{tpu_custom_call.1} parent=87 // loop_body
                %v2839 = vld [vmem:[%s2837] sm:$0xff]
                %2840 = vst [vmem:[%s2838] sm:$0xff] %v2839
                %s2841 = sadd.s32 1, %s2836
                %p2842 = scmp.ge.s32.totalorder %s2841, %s2824
                %s2843 = scalar_select %p2842, 0, %s2841
                %s2844 = smul.u32 %s2843, 8
                %s2845 = smul.u32 %s2843, 8
                %s2846 = scalar_lea.vmem %s2827, %s2844 [#allocation2]
                %s2847 = scalar_lea.vmem %s2829, %s2845
              $region100: #{tpu_custom_call.1} parent=87 // loop_footer
                %s2833 = sadd.s32 %s2831, 1
              $region101: #{tpu_custom_call.1} parent=87 // loop_footer_branch
                %2830 = sbr.rel target = $region97
              $region102: #{tpu_custom_call.1} parent=87 // loop_exit
                _
            $region88: #{tpu_custom_call.1} parent=79 // pred_fallthru
              _
          $region80: #{tpu_custom_call.1} parent=75 // pred_fallthru
            _
          %2901 = vnop
        $region76: #{tpu_custom_call.1} parent=71 // pred_fallthru
          _
      $region72: #{tpu_custom_call.1} parent=5 // pred_fallthru
        _
      %p2902 = scmp.le.s32.totalorder 2, %s19
      // Predicated region
      $region125: #{tpu_custom_call.1} parent=5 // pred_check
        %p2903 = pneg %p2902
      $region126: #{tpu_custom_call.1} parent=5 // pred_check_branch
        %2905 = sbr.rel (%p2903) target = $region128
      $region127: #{tpu_custom_call.1} parent=5 // pred_region
        %s2906 = ssub.s32 %s19, 2
        // Predicated region
        $region129: #{tpu_custom_call.1} parent=127 // pred_check
          %p2907 = pneg %p326
        $region130: #{tpu_custom_call.1} parent=127 // pred_check_branch
          %2909 = sbr.rel (%p2907) target = $region132
        $region131: #{tpu_custom_call.1} parent=127 // pred_region
          %s2910 = sand.u32 %s311, 1
          %s2911 = sand.u32 %s311, 1
          %s2912 = smul.addr %s2911, 24
          %s2913 = scalar_lea.vmem [#allocation2], %s2912
        $region132: #{tpu_custom_call.1} parent=127 // pred_fallthru
          _
      $region128: #{tpu_custom_call.1} parent=5 // pred_fallthru
        _
    $region6: #{tpu_custom_call.1} parent=1 // loop_footer
      %s23 = sadd.s32 1, %s19
    $region7: #{tpu_custom_call.1} parent=1 // loop_footer_branch
      %18 = sbr.rel target = $region3
    $region8: #{tpu_custom_call.1} parent=1 // loop_exit
      _

</llo_original>
